<compile_context>
chip_gen: v7x
topology: tpu7x:2x2x1
jax: 0.10.0
libtpu: 0.0.40
codegen_flags: <defaults>
</compile_context>

<pallas_src>
import functools

import jax
import jax.numpy as jnp
from jax.experimental import pallas as pl
from jax.experimental.pallas import tpu as pltpu

BN_EPS = 1e-5
VEC_W = 512  # lane width of the packed gamma/beta/bias slab

ENCODER_DIMS = [500, 256, 128, 78, 64, 32, 30]
DECODER_DIMS = [30, 32, 64, 78, 128, 256, 500]


def _pad_to(n, mult=128):
    return ((n + mult - 1) // mult) * mult


# ----------------------------------------------------------------------------
# Single fused kernel: 12 x (matmul [+bias | +BN(batch stats)+ReLU]) layers.
# ----------------------------------------------------------------------------

def _autoencoder_kernel(x_ref, w128_ref, w256_ref, w512_ref, vec_ref,
                        enc_out_ref, dec_out_ref, *, layers, n_enc):
    """layers: static tuple of (row_off, in_pad, out_pad, has_bn, vec_row)."""
    slab_by_width = {128: w128_ref, 256: w256_ref, 512: w512_ref}

    x = x_ref[...]  # f32, (batch, 512); padded cols are exactly 0
    for li, (row_off, in_pad, out_pad, has_bn, vec_row) in enumerate(layers):
        # Static slice of the packed bf16 weight slab -> (in_pad, out_pad).
        w = slab_by_width[out_pad][row_off:row_off + in_pad, :]
        y = jnp.dot(x.astype(jnp.bfloat16), w,
                    preferred_element_type=jnp.float32)
        if has_bn:
            gamma = vec_ref[vec_row:vec_row + 1, 0:out_pad]
            beta = vec_ref[vec_row + 1:vec_row + 2, 0:out_pad]
            # Training-mode BatchNorm1d, two-pass (numerically safe) variance,
            # folded to a per-feature scale/shift.  Linear bias omitted: it
            # cancels exactly under batch-mean subtraction.
            mean = jnp.mean(y, axis=0, keepdims=True)
            var = jnp.mean(jnp.square(y - mean), axis=0, keepdims=True)
            scale = gamma * jax.lax.rsqrt(var + BN_EPS)
            shift = beta - mean * scale
            x = jnp.maximum(y * scale + shift, 0.0)  # BN + ReLU
        else:
            x = y + vec_ref[vec_row:vec_row + 1, 0:out_pad]
        if li == n_enc - 1:
            enc_out_ref[...] = x.astype(enc_out_ref.dtype)
    dec_out_ref[...] = x.astype(dec_out_ref.dtype)


# ----------------------------------------------------------------------------
# Parameter construction (deterministic, mimics PyTorch default Linear init).
# ----------------------------------------------------------------------------

def _make_stack(key, dims):
    params = []
    n_layers = len(dims) - 1
    for li in range(n_layers):
        fan_in, fan_out = dims[li], dims[li + 1]
        key, kw, kb = jax.random.split(key, 3)
        bound = float(fan_in) ** -0.5
        w = jax.random.uniform(kw, (fan_in, fan_out), jnp.float32, -bound, bound)
        b = jax.random.uniform(kb, (1, fan_out), jnp.float32, -bound, bound)
        params.append(dict(
            w=w, b=b,
            gamma=jnp.ones((1, fan_out), jnp.float32),
            beta=jnp.zeros((1, fan_out), jnp.float32),
            has_bn=li < n_layers - 1,  # last Linear of each stack: no BN/ReLU
        ))
    return key, params


# ----------------------------------------------------------------------------
# One-time packing: 3 bf16 weight slabs (by padded output width) + 1 f32
# vector slab, plus static per-layer metadata for the kernel.
# ----------------------------------------------------------------------------

def _pack_params(enc_params, dec_params):
    slab_rows = {128: [], 256: [], 512: []}
    slab_off = {128: 0, 256: 0, 512: 0}
    vec_rows = []
    layers = []
    for p in enc_params + dec_params:
        fi, fo = p["w"].shape
        fi_p, fo_p = _pad_to(fi), _pad_to(fo)
        w_pad = jnp.pad(p["w"], ((0, fi_p - fi), (0, fo_p - fo)))
        slab_rows[fo_p].append(w_pad.astype(jnp.bfloat16))
        row_off = slab_off[fo_p]
        slab_off[fo_p] += fi_p

        vec_row = len(vec_rows)
        if p["has_bn"]:
            vec_rows.append(jnp.pad(p["gamma"], ((0, 0), (0, VEC_W - fo))))
            vec_rows.append(jnp.pad(p["beta"], ((0, 0), (0, VEC_W - fo))))
        else:
            vec_rows.append(jnp.pad(p["b"], ((0, 0), (0, VEC_W - fo))))
        layers.append((row_off, fi_p, fo_p, p["has_bn"], vec_row))

    slabs = {w: (jnp.concatenate(rs, axis=0) if rs
                 else jnp.zeros((16, w), jnp.bfloat16))
             for w, rs in slab_rows.items()}
    vecs = jnp.concatenate(vec_rows, axis=0)  # (22, 512) f32
    return slabs[128], slabs[256], slabs[512], vecs, tuple(layers)


def build_forward(enc_params, dec_params):
    w128, w256, w512, vecs, layers = _pack_params(enc_params, dec_params)
    n_enc = len(enc_params)
    in_dim = enc_params[0]["w"].shape[0]
    enc_out_dim = enc_params[-1]["w"].shape[1]
    dec_out_dim = dec_params[-1]["w"].shape[1]
    in_pad = _pad_to(in_dim)
    enc_out_pad = _pad_to(enc_out_dim)
    dec_out_pad = _pad_to(dec_out_dim)

    kernel = functools.partial(_autoencoder_kernel, layers=layers, n_enc=n_enc)
    vmem_spec = pl.BlockSpec(memory_space=pltpu.MemorySpace.VMEM)

    @jax.jit
    def forward(x, w128, w256, w512, vecs):
        batch = x.shape[0]
        x_pad = jnp.pad(x, ((0, 0), (0, in_pad - in_dim)))
        enc_p, dec_p = pl.pallas_call(
            kernel,
            out_shape=(jax.ShapeDtypeStruct((batch, enc_out_pad), jnp.float32),
                       jax.ShapeDtypeStruct((batch, dec_out_pad), jnp.float32)),
            in_specs=[vmem_spec] * 5,
            out_specs=(vmem_spec, vmem_spec),
            compiler_params=pltpu.CompilerParams(
                vmem_limit_bytes=8 * 1024 * 1024),
        )(x_pad, w128, w256, w512, vecs)
        return enc_p[:, :enc_out_dim], dec_p[:, :dec_out_dim]

    return lambda x: forward(x, w128, w256, w512, vecs)


# ----------------------------------------------------------------------------
# Pure-JAX reference (unpadded), using the same bf16 matmul operands / f32
# accumulation as the kernel so the comparison isolates kernel correctness.
# ----------------------------------------------------------------------------

def run_stack_ref(x, params):
    for p in params:
        y = jnp.dot(x.astype(jnp.bfloat16), p["w"].astype(jnp.bfloat16),
                    preferred_element_type=jnp.float32) + p["b"]
        if p["has_bn"]:
            mean = jnp.mean(y, axis=0, keepdims=True)
            var = jnp.mean((y - mean) ** 2, axis=0, keepdims=True)
            y = (y - mean) * jax.lax.rsqrt(var + BN_EPS) * p["gamma"] + p["beta"]
            y = jnp.maximum(y, 0.0)
        x = y
    return x


if __name__ == "__main__":
    key = jax.random.PRNGKey(0)
    key, enc_params = _make_stack(key, ENCODER_DIMS)
    key, dec_params = _make_stack(key, DECODER_DIMS)

    forward = build_forward(enc_params, dec_params)

    key, kx = jax.random.split(key)
    batch = 8  # BatchNorm1d (training mode) needs batch > 1
    x = jax.random.normal(kx, (batch, 500), jnp.float32)

    encoded, decoded = forward(x)
    encoded = jax.block_until_ready(encoded)
    decoded = jax.block_until_ready(decoded)

    # sanity check against the pure-JAX reference (same bf16 matmul operands)
    enc_ref = run_stack_ref(x, enc_params)
    dec_ref = run_stack_ref(enc_ref, dec_params)
    assert encoded.shape == (batch, 30) and decoded.shape == (batch, 500)
    assert jnp.allclose(encoded, enc_ref, atol=1e-2, rtol=1e-2)
    assert jnp.allclose(decoded, dec_ref, atol=1e-2, rtol=1e-2)

    print("KERNEL_OK")
</pallas_src>

<mosaic_0001>
module attributes {stable_mosaic.version = 11 : i64} {
  func.func @_autoencoder_kernel(%arg0: memref<8x512xf32, #tpu.memory_space<vmem>>, %arg1: memref<1280x128xbf16, #tpu.memory_space<vmem>>, %arg2: memref<640x256xbf16, #tpu.memory_space<vmem>>, %arg3: memref<256x512xbf16, #tpu.memory_space<vmem>>, %arg4: memref<22x512xf32, #tpu.memory_space<vmem>>, %arg5: memref<8x128xf32, #tpu.memory_space<vmem>>, %arg6: memref<8x512xf32, #tpu.memory_space<vmem>>) attributes {dimension_semantics = [], scalar_prefetch = 0 : i64, scratch_operands = 0 : i64, tpu.core_type = #tpu.core_type<tc>} {
    %c0 = arith.constant 0 : index
    %c0_0 = arith.constant 0 : index
    %0 = vector.load %arg0[%c0, %c0_0] : memref<8x512xf32, #tpu.memory_space<vmem>>, vector<8x512xf32>
    %c0_1 = arith.constant 0 : index
    %c0_2 = arith.constant 0 : index
    %1 = vector.load %arg2[%c0_1, %c0_2] : memref<640x256xbf16, #tpu.memory_space<vmem>>, vector<512x256xbf16>
    %2 = arith.truncf %0 : vector<8x512xf32> to vector<8x512xbf16>
    %cst = arith.constant dense<0.000000e+00> : vector<8x256xf32>
    %3 = tpu.matmul %2, %1, %cst {dimension_numbers = #tpu.dot_dimension_numbers<[1], [0], [0], [1], [0, 0, 1, 1], [], []>} : vector<8x512xbf16>, vector<512x256xbf16>, vector<8x256xf32> -> vector<8x256xf32>
    %c0_3 = arith.constant 0 : index
    %c0_4 = arith.constant 0 : index
    %4 = vector.load %arg4[%c0_3, %c0_4] : memref<22x512xf32, #tpu.memory_space<vmem>>, vector<1x256xf32>
    %c1 = arith.constant 1 : index
    %c0_5 = arith.constant 0 : index
    %5 = vector.load %arg4[%c1, %c0_5] : memref<22x512xf32, #tpu.memory_space<vmem>>, vector<1x256xf32>
    %cst_6 = arith.constant dense<0.000000e+00> : vector<256xf32>
    %6 = vector.multi_reduction <add>, %3, %cst_6 [0] : vector<8x256xf32> to vector<256xf32>
    %7 = vector.shape_cast %6 : vector<256xf32> to vector<1x256xf32>
    %cst_7 = arith.constant 8.000000e+00 : f32
    %8 = vector.broadcast %cst_7 : f32 to vector<1x256xf32>
    %9 = arith.divf %7, %8 : vector<1x256xf32>
    %10 = vector.broadcast %9 : vector<1x256xf32> to vector<8x256xf32>
    %11 = arith.subf %3, %10 : vector<8x256xf32>
    %12 = arith.mulf %11, %11 : vector<8x256xf32>
    %cst_8 = arith.constant dense<0.000000e+00> : vector<256xf32>
    %13 = vector.multi_reduction <add>, %12, %cst_8 [0] : vector<8x256xf32> to vector<256xf32>
    %14 = vector.shape_cast %13 : vector<256xf32> to vector<1x256xf32>
    %cst_9 = arith.constant 8.000000e+00 : f32
    %15 = vector.broadcast %cst_9 : f32 to vector<1x256xf32>
    %16 = arith.divf %14, %15 : vector<1x256xf32>
    %cst_10 = arith.constant 9.99999974E-6 : f32
    %17 = vector.broadcast %cst_10 : f32 to vector<1x256xf32>
    %18 = arith.addf %16, %17 : vector<1x256xf32>
    %19 = math.rsqrt %18 : vector<1x256xf32>
    %20 = arith.mulf %4, %19 : vector<1x256xf32>
    %21 = arith.mulf %9, %20 : vector<1x256xf32>
    %22 = arith.subf %5, %21 : vector<1x256xf32>
    %23 = vector.broadcast %20 : vector<1x256xf32> to vector<8x256xf32>
    %24 = arith.mulf %3, %23 : vector<8x256xf32>
    %25 = vector.broadcast %22 : vector<1x256xf32> to vector<8x256xf32>
    %26 = arith.addf %24, %25 : vector<8x256xf32>
    %cst_11 = arith.constant 0.000000e+00 : f32
    %27 = vector.broadcast %cst_11 : f32 to vector<8x256xf32>
    %28 = arith.maximumf %26, %27 : vector<8x256xf32>
    %c0_12 = arith.constant 0 : index
    %c0_13 = arith.constant 0 : index
    %29 = vector.load %arg1[%c0_12, %c0_13] : memref<1280x128xbf16, #tpu.memory_space<vmem>>, vector<256x128xbf16>
    %30 = arith.truncf %28 : vector<8x256xf32> to vector<8x256xbf16>
    %cst_14 = arith.constant dense<0.000000e+00> : vector<8x128xf32>
    %31 = tpu.matmul %30, %29, %cst_14 {dimension_numbers = #tpu.dot_dimension_numbers<[1], [0], [0], [1], [0, 0, 1, 1], [], []>} : vector<8x256xbf16>, vector<256x128xbf16>, vector<8x128xf32> -> vector<8x128xf32>
    %c2 = arith.constant 2 : index
    %c0_15 = arith.constant 0 : index
    %32 = vector.load %arg4[%c2, %c0_15] : memref<22x512xf32, #tpu.memory_space<vmem>>, vector<1x128xf32>
    %c3 = arith.constant 3 : index
    %c0_16 = arith.constant 0 : index
    %33 = vector.load %arg4[%c3, %c0_16] : memref<22x512xf32, #tpu.memory_space<vmem>>, vector<1x128xf32>
    %cst_17 = arith.constant dense<0.000000e+00> : vector<128xf32>
    %34 = vector.multi_reduction <add>, %31, %cst_17 [0] : vector<8x128xf32> to vector<128xf32>
    %35 = vector.shape_cast %34 : vector<128xf32> to vector<1x128xf32>
    %cst_18 = arith.constant 8.000000e+00 : f32
    %36 = vector.broadcast %cst_18 : f32 to vector<1x128xf32>
    %37 = arith.divf %35, %36 : vector<1x128xf32>
    %38 = vector.broadcast %37 : vector<1x128xf32> to vector<8x128xf32>
    %39 = arith.subf %31, %38 : vector<8x128xf32>
    %40 = arith.mulf %39, %39 : vector<8x128xf32>
    %cst_19 = arith.constant dense<0.000000e+00> : vector<128xf32>
    %41 = vector.multi_reduction <add>, %40, %cst_19 [0] : vector<8x128xf32> to vector<128xf32>
    %42 = vector.shape_cast %41 : vector<128xf32> to vector<1x128xf32>
    %cst_20 = arith.constant 8.000000e+00 : f32
    %43 = vector.broadcast %cst_20 : f32 to vector<1x128xf32>
    %44 = arith.divf %42, %43 : vector<1x128xf32>
    %cst_21 = arith.constant 9.99999974E-6 : f32
    %45 = vector.broadcast %cst_21 : f32 to vector<1x128xf32>
    %46 = arith.addf %44, %45 : vector<1x128xf32>
    %47 = math.rsqrt %46 : vector<1x128xf32>
    %48 = arith.mulf %32, %47 : vector<1x128xf32>
    %49 = arith.mulf %37, %48 : vector<1x128xf32>
    %50 = arith.subf %33, %49 : vector<1x128xf32>
    %51 = vector.broadcast %48 : vector<1x128xf32> to vector<8x128xf32>
    %52 = arith.mulf %31, %51 : vector<8x128xf32>
    %53 = vector.broadcast %50 : vector<1x128xf32> to vector<8x128xf32>
    %54 = arith.addf %52, %53 : vector<8x128xf32>
    %cst_22 = arith.constant 0.000000e+00 : f32
    %55 = vector.broadcast %cst_22 : f32 to vector<8x128xf32>
    %56 = arith.maximumf %54, %55 : vector<8x128xf32>
    %c256 = arith.constant 256 : index
    %c0_23 = arith.constant 0 : index
    %57 = vector.load %arg1[%c256, %c0_23] : memref<1280x128xbf16, #tpu.memory_space<vmem>>, vector<128x128xbf16>
    %58 = arith.truncf %56 : vector<8x128xf32> to vector<8x128xbf16>
    %cst_24 = arith.constant dense<0.000000e+00> : vector<8x128xf32>
    %59 = tpu.matmul %58, %57, %cst_24 {dimension_numbers = #tpu.dot_dimension_numbers<[1], [0], [0], [1], [0, 0, 1, 1], [], []>} : vector<8x128xbf16>, vector<128x128xbf16>, vector<8x128xf32> -> vector<8x128xf32>
    %c4 = arith.constant 4 : index
    %c0_25 = arith.constant 0 : index
    %60 = vector.load %arg4[%c4, %c0_25] : memref<22x512xf32, #tpu.memory_space<vmem>>, vector<1x128xf32>
    %c5 = arith.constant 5 : index
    %c0_26 = arith.constant 0 : index
    %61 = vector.load %arg4[%c5, %c0_26] : memref<22x512xf32, #tpu.memory_space<vmem>>, vector<1x128xf32>
    %cst_27 = arith.constant dense<0.000000e+00> : vector<128xf32>
    %62 = vector.multi_reduction <add>, %59, %cst_27 [0] : vector<8x128xf32> to vector<128xf32>
    %63 = vector.shape_cast %62 : vector<128xf32> to vector<1x128xf32>
    %cst_28 = arith.constant 8.000000e+00 : f32
    %64 = vector.broadcast %cst_28 : f32 to vector<1x128xf32>
    %65 = arith.divf %63, %64 : vector<1x128xf32>
    %66 = vector.broadcast %65 : vector<1x128xf32> to vector<8x128xf32>
    %67 = arith.subf %59, %66 : vector<8x128xf32>
    %68 = arith.mulf %67, %67 : vector<8x128xf32>
    %cst_29 = arith.constant dense<0.000000e+00> : vector<128xf32>
    %69 = vector.multi_reduction <add>, %68, %cst_29 [0] : vector<8x128xf32> to vector<128xf32>
    %70 = vector.shape_cast %69 : vector<128xf32> to vector<1x128xf32>
    %cst_30 = arith.constant 8.000000e+00 : f32
    %71 = vector.broadcast %cst_30 : f32 to vector<1x128xf32>
    %72 = arith.divf %70, %71 : vector<1x128xf32>
    %cst_31 = arith.constant 9.99999974E-6 : f32
    %73 = vector.broadcast %cst_31 : f32 to vector<1x128xf32>
    %74 = arith.addf %72, %73 : vector<1x128xf32>
    %75 = math.rsqrt %74 : vector<1x128xf32>
    %76 = arith.mulf %60, %75 : vector<1x128xf32>
    %77 = arith.mulf %65, %76 : vector<1x128xf32>
    %78 = arith.subf %61, %77 : vector<1x128xf32>
    %79 = vector.broadcast %76 : vector<1x128xf32> to vector<8x128xf32>
    %80 = arith.mulf %59, %79 : vector<8x128xf32>
    %81 = vector.broadcast %78 : vector<1x128xf32> to vector<8x128xf32>
    %82 = arith.addf %80, %81 : vector<8x128xf32>
    %cst_32 = arith.constant 0.000000e+00 : f32
    %83 = vector.broadcast %cst_32 : f32 to vector<8x128xf32>
    %84 = arith.maximumf %82, %83 : vector<8x128xf32>
    %c384 = arith.constant 384 : index
    %c0_33 = arith.constant 0 : index
    %85 = vector.load %arg1[%c384, %c0_33] : memref<1280x128xbf16, #tpu.memory_space<vmem>>, vector<128x128xbf16>
    %86 = arith.truncf %84 : vector<8x128xf32> to vector<8x128xbf16>
    %cst_34 = arith.constant dense<0.000000e+00> : vector<8x128xf32>
    %87 = tpu.matmul %86, %85, %cst_34 {dimension_numbers = #tpu.dot_dimension_numbers<[1], [0], [0], [1], [0, 0, 1, 1], [], []>} : vector<8x128xbf16>, vector<128x128xbf16>, vector<8x128xf32> -> vector<8x128xf32>
    %c6 = arith.constant 6 : index
    %c0_35 = arith.constant 0 : index
    %88 = vector.load %arg4[%c6, %c0_35] : memref<22x512xf32, #tpu.memory_space<vmem>>, vector<1x128xf32>
    %c7 = arith.constant 7 : index
    %c0_36 = arith.constant 0 : index
    %89 = vector.load %arg4[%c7, %c0_36] : memref<22x512xf32, #tpu.memory_space<vmem>>, vector<1x128xf32>
    %cst_37 = arith.constant dense<0.000000e+00> : vector<128xf32>
    %90 = vector.multi_reduction <add>, %87, %cst_37 [0] : vector<8x128xf32> to vector<128xf32>
    %91 = vector.shape_cast %90 : vector<128xf32> to vector<1x128xf32>
    %cst_38 = arith.constant 8.000000e+00 : f32
    %92 = vector.broadcast %cst_38 : f32 to vector<1x128xf32>
    %93 = arith.divf %91, %92 : vector<1x128xf32>
    %94 = vector.broadcast %93 : vector<1x128xf32> to vector<8x128xf32>
    %95 = arith.subf %87, %94 : vector<8x128xf32>
    %96 = arith.mulf %95, %95 : vector<8x128xf32>
    %cst_39 = arith.constant dense<0.000000e+00> : vector<128xf32>
    %97 = vector.multi_reduction <add>, %96, %cst_39 [0] : vector<8x128xf32> to vector<128xf32>
    %98 = vector.shape_cast %97 : vector<128xf32> to vector<1x128xf32>
    %cst_40 = arith.constant 8.000000e+00 : f32
    %99 = vector.broadcast %cst_40 : f32 to vector<1x128xf32>
    %100 = arith.divf %98, %99 : vector<1x128xf32>
    %cst_41 = arith.constant 9.99999974E-6 : f32
    %101 = vector.broadcast %cst_41 : f32 to vector<1x128xf32>
    %102 = arith.addf %100, %101 : vector<1x128xf32>
    %103 = math.rsqrt %102 : vector<1x128xf32>
    %104 = arith.mulf %88, %103 : vector<1x128xf32>
    %105 = arith.mulf %93, %104 : vector<1x128xf32>
    %106 = arith.subf %89, %105 : vector<1x128xf32>
    %107 = vector.broadcast %104 : vector<1x128xf32> to vector<8x128xf32>
    %108 = arith.mulf %87, %107 : vector<8x128xf32>
    %109 = vector.broadcast %106 : vector<1x128xf32> to vector<8x128xf32>
    %110 = arith.addf %108, %109 : vector<8x128xf32>
    %cst_42 = arith.constant 0.000000e+00 : f32
    %111 = vector.broadcast %cst_42 : f32 to vector<8x128xf32>
    %112 = arith.maximumf %110, %111 : vector<8x128xf32>
    %c512 = arith.constant 512 : index
    %c0_43 = arith.constant 0 : index
    %113 = vector.load %arg1[%c512, %c0_43] : memref<1280x128xbf16, #tpu.memory_space<vmem>>, vector<128x128xbf16>
    %114 = arith.truncf %112 : vector<8x128xf32> to vector<8x128xbf16>
    %cst_44 = arith.constant dense<0.000000e+00> : vector<8x128xf32>
    %115 = tpu.matmul %114, %113, %cst_44 {dimension_numbers = #tpu.dot_dimension_numbers<[1], [0], [0], [1], [0, 0, 1, 1], [], []>} : vector<8x128xbf16>, vector<128x128xbf16>, vector<8x128xf32> -> vector<8x128xf32>
    %c8 = arith.constant 8 : index
    %c0_45 = arith.constant 0 : index
    %116 = vector.load %arg4[%c8, %c0_45] : memref<22x512xf32, #tpu.memory_space<vmem>>, vector<1x128xf32>
    %c9 = arith.constant 9 : index
    %c0_46 = arith.constant 0 : index
    %117 = vector.load %arg4[%c9, %c0_46] : memref<22x512xf32, #tpu.memory_space<vmem>>, vector<1x128xf32>
    %cst_47 = arith.constant dense<0.000000e+00> : vector<128xf32>
    %118 = vector.multi_reduction <add>, %115, %cst_47 [0] : vector<8x128xf32> to vector<128xf32>
    %119 = vector.shape_cast %118 : vector<128xf32> to vector<1x128xf32>
    %cst_48 = arith.constant 8.000000e+00 : f32
    %120 = vector.broadcast %cst_48 : f32 to vector<1x128xf32>
    %121 = arith.divf %119, %120 : vector<1x128xf32>
    %122 = vector.broadcast %121 : vector<1x128xf32> to vector<8x128xf32>
    %123 = arith.subf %115, %122 : vector<8x128xf32>
    %124 = arith.mulf %123, %123 : vector<8x128xf32>
    %cst_49 = arith.constant dense<0.000000e+00> : vector<128xf32>
    %125 = vector.multi_reduction <add>, %124, %cst_49 [0] : vector<8x128xf32> to vector<128xf32>
    %126 = vector.shape_cast %125 : vector<128xf32> to vector<1x128xf32>
    %cst_50 = arith.constant 8.000000e+00 : f32
    %127 = vector.broadcast %cst_50 : f32 to vector<1x128xf32>
    %128 = arith.divf %126, %127 : vector<1x128xf32>
    %cst_51 = arith.constant 9.99999974E-6 : f32
    %129 = vector.broadcast %cst_51 : f32 to vector<1x128xf32>
    %130 = arith.addf %128, %129 : vector<1x128xf32>
    %131 = math.rsqrt %130 : vector<1x128xf32>
    %132 = arith.mulf %116, %131 : vector<1x128xf32>
    %133 = arith.mulf %121, %132 : vector<1x128xf32>
    %134 = arith.subf %117, %133 : vector<1x128xf32>
    %135 = vector.broadcast %132 : vector<1x128xf32> to vector<8x128xf32>
    %136 = arith.mulf %115, %135 : vector<8x128xf32>
    %137 = vector.broadcast %134 : vector<1x128xf32> to vector<8x128xf32>
    %138 = arith.addf %136, %137 : vector<8x128xf32>
    %cst_52 = arith.constant 0.000000e+00 : f32
    %139 = vector.broadcast %cst_52 : f32 to vector<8x128xf32>
    %140 = arith.maximumf %138, %139 : vector<8x128xf32>
    %c640 = arith.constant 640 : index
    %c0_53 = arith.constant 0 : index
    %141 = vector.load %arg1[%c640, %c0_53] : memref<1280x128xbf16, #tpu.memory_space<vmem>>, vector<128x128xbf16>
    %142 = arith.truncf %140 : vector<8x128xf32> to vector<8x128xbf16>
    %cst_54 = arith.constant dense<0.000000e+00> : vector<8x128xf32>
    %143 = tpu.matmul %142, %141, %cst_54 {dimension_numbers = #tpu.dot_dimension_numbers<[1], [0], [0], [1], [0, 0, 1, 1], [], []>} : vector<8x128xbf16>, vector<128x128xbf16>, vector<8x128xf32> -> vector<8x128xf32>
    %c10 = arith.constant 10 : index
    %c0_55 = arith.constant 0 : index
    %144 = vector.load %arg4[%c10, %c0_55] : memref<22x512xf32, #tpu.memory_space<vmem>>, vector<1x128xf32>
    %145 = vector.broadcast %144 : vector<1x128xf32> to vector<8x128xf32>
    %146 = arith.addf %143, %145 : vector<8x128xf32>
    %c0_56 = arith.constant 0 : index
    %c0_57 = arith.constant 0 : index
    %147 = vector.load %arg5[%c0_56, %c0_57] : memref<8x128xf32, #tpu.memory_space<vmem>>, vector<8x128xf32>
    tpu.vector_store %arg5[%c0_56, %c0_57], %146 {strides = array<i32>} : memref<8x128xf32, #tpu.memory_space<vmem>>, vector<8x128xf32>,
    %c768 = arith.constant 768 : index
    %c0_58 = arith.constant 0 : index
    %148 = vector.load %arg1[%c768, %c0_58] : memref<1280x128xbf16, #tpu.memory_space<vmem>>, vector<128x128xbf16>
    %149 = arith.truncf %146 : vector<8x128xf32> to vector<8x128xbf16>
    %cst_59 = arith.constant dense<0.000000e+00> : vector<8x128xf32>
    %150 = tpu.matmul %149, %148, %cst_59 {dimension_numbers = #tpu.dot_dimension_numbers<[1], [0], [0], [1], [0, 0, 1, 1], [], []>} : vector<8x128xbf16>, vector<128x128xbf16>, vector<8x128xf32> -> vector<8x128xf32>
    %c11 = arith.constant 11 : index
    %c0_60 = arith.constant 0 : index
    %151 = vector.load %arg4[%c11, %c0_60] : memref<22x512xf32, #tpu.memory_space<vmem>>, vector<1x128xf32>
    %c12 = arith.constant 12 : index
    %c0_61 = arith.constant 0 : index
    %152 = vector.load %arg4[%c12, %c0_61] : memref<22x512xf32, #tpu.memory_space<vmem>>, vector<1x128xf32>
    %cst_62 = arith.constant dense<0.000000e+00> : vector<128xf32>
    %153 = vector.multi_reduction <add>, %150, %cst_62 [0] : vector<8x128xf32> to vector<128xf32>
    %154 = vector.shape_cast %153 : vector<128xf32> to vector<1x128xf32>
    %cst_63 = arith.constant 8.000000e+00 : f32
    %155 = vector.broadcast %cst_63 : f32 to vector<1x128xf32>
    %156 = arith.divf %154, %155 : vector<1x128xf32>
    %157 = vector.broadcast %156 : vector<1x128xf32> to vector<8x128xf32>
    %158 = arith.subf %150, %157 : vector<8x128xf32>
    %159 = arith.mulf %158, %158 : vector<8x128xf32>
    %cst_64 = arith.constant dense<0.000000e+00> : vector<128xf32>
    %160 = vector.multi_reduction <add>, %159, %cst_64 [0] : vector<8x128xf32> to vector<128xf32>
    %161 = vector.shape_cast %160 : vector<128xf32> to vector<1x128xf32>
    %cst_65 = arith.constant 8.000000e+00 : f32
    %162 = vector.broadcast %cst_65 : f32 to vector<1x128xf32>
    %163 = arith.divf %161, %162 : vector<1x128xf32>
    %cst_66 = arith.constant 9.99999974E-6 : f32
    %164 = vector.broadcast %cst_66 : f32 to vector<1x128xf32>
    %165 = arith.addf %163, %164 : vector<1x128xf32>
    %166 = math.rsqrt %165 : vector<1x128xf32>
    %167 = arith.mulf %151, %166 : vector<1x128xf32>
    %168 = arith.mulf %156, %167 : vector<1x128xf32>
    %169 = arith.subf %152, %168 : vector<1x128xf32>
    %170 = vector.broadcast %167 : vector<1x128xf32> to vector<8x128xf32>
    %171 = arith.mulf %150, %170 : vector<8x128xf32>
    %172 = vector.broadcast %169 : vector<1x128xf32> to vector<8x128xf32>
    %173 = arith.addf %171, %172 : vector<8x128xf32>
    %cst_67 = arith.constant 0.000000e+00 : f32
    %174 = vector.broadcast %cst_67 : f32 to vector<8x128xf32>
    %175 = arith.maximumf %173, %174 : vector<8x128xf32>
    %c896 = arith.constant 896 : index
    %c0_68 = arith.constant 0 : index
    %176 = vector.load %arg1[%c896, %c0_68] : memref<1280x128xbf16, #tpu.memory_space<vmem>>, vector<128x128xbf16>
    %177 = arith.truncf %175 : vector<8x128xf32> to vector<8x128xbf16>
    %cst_69 = arith.constant dense<0.000000e+00> : vector<8x128xf32>
    %178 = tpu.matmul %177, %176, %cst_69 {dimension_numbers = #tpu.dot_dimension_numbers<[1], [0], [0], [1], [0, 0, 1, 1], [], []>} : vector<8x128xbf16>, vector<128x128xbf16>, vector<8x128xf32> -> vector<8x128xf32>
    %c13 = arith.constant 13 : index
    %c0_70 = arith.constant 0 : index
    %179 = vector.load %arg4[%c13, %c0_70] : memref<22x512xf32, #tpu.memory_space<vmem>>, vector<1x128xf32>
    %c14 = arith.constant 14 : index
    %c0_71 = arith.constant 0 : index
    %180 = vector.load %arg4[%c14, %c0_71] : memref<22x512xf32, #tpu.memory_space<vmem>>, vector<1x128xf32>
    %cst_72 = arith.constant dense<0.000000e+00> : vector<128xf32>
    %181 = vector.multi_reduction <add>, %178, %cst_72 [0] : vector<8x128xf32> to vector<128xf32>
    %182 = vector.shape_cast %181 : vector<128xf32> to vector<1x128xf32>
    %cst_73 = arith.constant 8.000000e+00 : f32
    %183 = vector.broadcast %cst_73 : f32 to vector<1x128xf32>
    %184 = arith.divf %182, %183 : vector<1x128xf32>
    %185 = vector.broadcast %184 : vector<1x128xf32> to vector<8x128xf32>
    %186 = arith.subf %178, %185 : vector<8x128xf32>
    %187 = arith.mulf %186, %186 : vector<8x128xf32>
    %cst_74 = arith.constant dense<0.000000e+00> : vector<128xf32>
    %188 = vector.multi_reduction <add>, %187, %cst_74 [0] : vector<8x128xf32> to vector<128xf32>
    %189 = vector.shape_cast %188 : vector<128xf32> to vector<1x128xf32>
    %cst_75 = arith.constant 8.000000e+00 : f32
    %190 = vector.broadcast %cst_75 : f32 to vector<1x128xf32>
    %191 = arith.divf %189, %190 : vector<1x128xf32>
    %cst_76 = arith.constant 9.99999974E-6 : f32
    %192 = vector.broadcast %cst_76 : f32 to vector<1x128xf32>
    %193 = arith.addf %191, %192 : vector<1x128xf32>
    %194 = math.rsqrt %193 : vector<1x128xf32>
    %195 = arith.mulf %179, %194 : vector<1x128xf32>
    %196 = arith.mulf %184, %195 : vector<1x128xf32>
    %197 = arith.subf %180, %196 : vector<1x128xf32>
    %198 = vector.broadcast %195 : vector<1x128xf32> to vector<8x128xf32>
    %199 = arith.mulf %178, %198 : vector<8x128xf32>
    %200 = vector.broadcast %197 : vector<1x128xf32> to vector<8x128xf32>
    %201 = arith.addf %199, %200 : vector<8x128xf32>
    %cst_77 = arith.constant 0.000000e+00 : f32
    %202 = vector.broadcast %cst_77 : f32 to vector<8x128xf32>
    %203 = arith.maximumf %201, %202 : vector<8x128xf32>
    %c1024 = arith.constant 1024 : index
    %c0_78 = arith.constant 0 : index
    %204 = vector.load %arg1[%c1024, %c0_78] : memref<1280x128xbf16, #tpu.memory_space<vmem>>, vector<128x128xbf16>
    %205 = arith.truncf %203 : vector<8x128xf32> to vector<8x128xbf16>
    %cst_79 = arith.constant dense<0.000000e+00> : vector<8x128xf32>
    %206 = tpu.matmul %205, %204, %cst_79 {dimension_numbers = #tpu.dot_dimension_numbers<[1], [0], [0], [1], [0, 0, 1, 1], [], []>} : vector<8x128xbf16>, vector<128x128xbf16>, vector<8x128xf32> -> vector<8x128xf32>
    %c15 = arith.constant 15 : index
    %c0_80 = arith.constant 0 : index
    %207 = vector.load %arg4[%c15, %c0_80] : memref<22x512xf32, #tpu.memory_space<vmem>>, vector<1x128xf32>
    %c16 = arith.constant 16 : index
    %c0_81 = arith.constant 0 : index
    %208 = vector.load %arg4[%c16, %c0_81] : memref<22x512xf32, #tpu.memory_space<vmem>>, vector<1x128xf32>
    %cst_82 = arith.constant dense<0.000000e+00> : vector<128xf32>
    %209 = vector.multi_reduction <add>, %206, %cst_82 [0] : vector<8x128xf32> to vector<128xf32>
    %210 = vector.shape_cast %209 : vector<128xf32> to vector<1x128xf32>
    %cst_83 = arith.constant 8.000000e+00 : f32
    %211 = vector.broadcast %cst_83 : f32 to vector<1x128xf32>
    %212 = arith.divf %210, %211 : vector<1x128xf32>
    %213 = vector.broadcast %212 : vector<1x128xf32> to vector<8x128xf32>
    %214 = arith.subf %206, %213 : vector<8x128xf32>
    %215 = arith.mulf %214, %214 : vector<8x128xf32>
    %cst_84 = arith.constant dense<0.000000e+00> : vector<128xf32>
    %216 = vector.multi_reduction <add>, %215, %cst_84 [0] : vector<8x128xf32> to vector<128xf32>
    %217 = vector.shape_cast %216 : vector<128xf32> to vector<1x128xf32>
    %cst_85 = arith.constant 8.000000e+00 : f32
    %218 = vector.broadcast %cst_85 : f32 to vector<1x128xf32>
    %219 = arith.divf %217, %218 : vector<1x128xf32>
    %cst_86 = arith.constant 9.99999974E-6 : f32
    %220 = vector.broadcast %cst_86 : f32 to vector<1x128xf32>
    %221 = arith.addf %219, %220 : vector<1x128xf32>
    %222 = math.rsqrt %221 : vector<1x128xf32>
    %223 = arith.mulf %207, %222 : vector<1x128xf32>
    %224 = arith.mulf %212, %223 : vector<1x128xf32>
    %225 = arith.subf %208, %224 : vector<1x128xf32>
    %226 = vector.broadcast %223 : vector<1x128xf32> to vector<8x128xf32>
    %227 = arith.mulf %206, %226 : vector<8x128xf32>
    %228 = vector.broadcast %225 : vector<1x128xf32> to vector<8x128xf32>
    %229 = arith.addf %227, %228 : vector<8x128xf32>
    %cst_87 = arith.constant 0.000000e+00 : f32
    %230 = vector.broadcast %cst_87 : f32 to vector<8x128xf32>
    %231 = arith.maximumf %229, %230 : vector<8x128xf32>
    %c1152 = arith.constant 1152 : index
    %c0_88 = arith.constant 0 : index
    %232 = vector.load %arg1[%c1152, %c0_88] : memref<1280x128xbf16, #tpu.memory_space<vmem>>, vector<128x128xbf16>
    %233 = arith.truncf %231 : vector<8x128xf32> to vector<8x128xbf16>
    %cst_89 = arith.constant dense<0.000000e+00> : vector<8x128xf32>
    %234 = tpu.matmul %233, %232, %cst_89 {dimension_numbers = #tpu.dot_dimension_numbers<[1], [0], [0], [1], [0, 0, 1, 1], [], []>} : vector<8x128xbf16>, vector<128x128xbf16>, vector<8x128xf32> -> vector<8x128xf32>
    %c17 = arith.constant 17 : index
    %c0_90 = arith.constant 0 : index
    %235 = vector.load %arg4[%c17, %c0_90] : memref<22x512xf32, #tpu.memory_space<vmem>>, vector<1x128xf32>
    %c18 = arith.constant 18 : index
    %c0_91 = arith.constant 0 : index
    %236 = vector.load %arg4[%c18, %c0_91] : memref<22x512xf32, #tpu.memory_space<vmem>>, vector<1x128xf32>
    %cst_92 = arith.constant dense<0.000000e+00> : vector<128xf32>
    %237 = vector.multi_reduction <add>, %234, %cst_92 [0] : vector<8x128xf32> to vector<128xf32>
    %238 = vector.shape_cast %237 : vector<128xf32> to vector<1x128xf32>
    %cst_93 = arith.constant 8.000000e+00 : f32
    %239 = vector.broadcast %cst_93 : f32 to vector<1x128xf32>
    %240 = arith.divf %238, %239 : vector<1x128xf32>
    %241 = vector.broadcast %240 : vector<1x128xf32> to vector<8x128xf32>
    %242 = arith.subf %234, %241 : vector<8x128xf32>
    %243 = arith.mulf %242, %242 : vector<8x128xf32>
    %cst_94 = arith.constant dense<0.000000e+00> : vector<128xf32>
    %244 = vector.multi_reduction <add>, %243, %cst_94 [0] : vector<8x128xf32> to vector<128xf32>
    %245 = vector.shape_cast %244 : vector<128xf32> to vector<1x128xf32>
    %cst_95 = arith.constant 8.000000e+00 : f32
    %246 = vector.broadcast %cst_95 : f32 to vector<1x128xf32>
    %247 = arith.divf %245, %246 : vector<1x128xf32>
    %cst_96 = arith.constant 9.99999974E-6 : f32
    %248 = vector.broadcast %cst_96 : f32 to vector<1x128xf32>
    %249 = arith.addf %247, %248 : vector<1x128xf32>
    %250 = math.rsqrt %249 : vector<1x128xf32>
    %251 = arith.mulf %235, %250 : vector<1x128xf32>
    %252 = arith.mulf %240, %251 : vector<1x128xf32>
    %253 = arith.subf %236, %252 : vector<1x128xf32>
    %254 = vector.broadcast %251 : vector<1x128xf32> to vector<8x128xf32>
    %255 = arith.mulf %234, %254 : vector<8x128xf32>
    %256 = vector.broadcast %253 : vector<1x128xf32> to vector<8x128xf32>
    %257 = arith.addf %255, %256 : vector<8x128xf32>
    %cst_97 = arith.constant 0.000000e+00 : f32
    %258 = vector.broadcast %cst_97 : f32 to vector<8x128xf32>
    %259 = arith.maximumf %257, %258 : vector<8x128xf32>
    %c512_98 = arith.constant 512 : index
    %c0_99 = arith.constant 0 : index
    %260 = vector.load %arg2[%c512_98, %c0_99] : memref<640x256xbf16, #tpu.memory_space<vmem>>, vector<128x256xbf16>
    %261 = arith.truncf %259 : vector<8x128xf32> to vector<8x128xbf16>
    %cst_100 = arith.constant dense<0.000000e+00> : vector<8x256xf32>
    %262 = tpu.matmul %261, %260, %cst_100 {dimension_numbers = #tpu.dot_dimension_numbers<[1], [0], [0], [1], [0, 0, 1, 1], [], []>} : vector<8x128xbf16>, vector<128x256xbf16>, vector<8x256xf32> -> vector<8x256xf32>
    %c19 = arith.constant 19 : index
    %c0_101 = arith.constant 0 : index
    %263 = vector.load %arg4[%c19, %c0_101] : memref<22x512xf32, #tpu.memory_space<vmem>>, vector<1x256xf32>
    %c20 = arith.constant 20 : index
    %c0_102 = arith.constant 0 : index
    %264 = vector.load %arg4[%c20, %c0_102] : memref<22x512xf32, #tpu.memory_space<vmem>>, vector<1x256xf32>
    %cst_103 = arith.constant dense<0.000000e+00> : vector<256xf32>
    %265 = vector.multi_reduction <add>, %262, %cst_103 [0] : vector<8x256xf32> to vector<256xf32>
    %266 = vector.shape_cast %265 : vector<256xf32> to vector<1x256xf32>
    %cst_104 = arith.constant 8.000000e+00 : f32
    %267 = vector.broadcast %cst_104 : f32 to vector<1x256xf32>
    %268 = arith.divf %266, %267 : vector<1x256xf32>
    %269 = vector.broadcast %268 : vector<1x256xf32> to vector<8x256xf32>
    %270 = arith.subf %262, %269 : vector<8x256xf32>
    %271 = arith.mulf %270, %270 : vector<8x256xf32>
    %cst_105 = arith.constant dense<0.000000e+00> : vector<256xf32>
    %272 = vector.multi_reduction <add>, %271, %cst_105 [0] : vector<8x256xf32> to vector<256xf32>
    %273 = vector.shape_cast %272 : vector<256xf32> to vector<1x256xf32>
    %cst_106 = arith.constant 8.000000e+00 : f32
    %274 = vector.broadcast %cst_106 : f32 to vector<1x256xf32>
    %275 = arith.divf %273, %274 : vector<1x256xf32>
    %cst_107 = arith.constant 9.99999974E-6 : f32
    %276 = vector.broadcast %cst_107 : f32 to vector<1x256xf32>
    %277 = arith.addf %275, %276 : vector<1x256xf32>
    %278 = math.rsqrt %277 : vector<1x256xf32>
    %279 = arith.mulf %263, %278 : vector<1x256xf32>
    %280 = arith.mulf %268, %279 : vector<1x256xf32>
    %281 = arith.subf %264, %280 : vector<1x256xf32>
    %282 = vector.broadcast %279 : vector<1x256xf32> to vector<8x256xf32>
    %283 = arith.mulf %262, %282 : vector<8x256xf32>
    %284 = vector.broadcast %281 : vector<1x256xf32> to vector<8x256xf32>
    %285 = arith.addf %283, %284 : vector<8x256xf32>
    %cst_108 = arith.constant 0.000000e+00 : f32
    %286 = vector.broadcast %cst_108 : f32 to vector<8x256xf32>
    %287 = arith.maximumf %285, %286 : vector<8x256xf32>
    %c0_109 = arith.constant 0 : index
    %c0_110 = arith.constant 0 : index
    %288 = vector.load %arg3[%c0_109, %c0_110] : memref<256x512xbf16, #tpu.memory_space<vmem>>, vector<256x512xbf16>
    %289 = arith.truncf %287 : vector<8x256xf32> to vector<8x256xbf16>
    %cst_111 = arith.constant dense<0.000000e+00> : vector<8x512xf32>
    %290 = tpu.matmul %289, %288, %cst_111 {dimension_numbers = #tpu.dot_dimension_numbers<[1], [0], [0], [1], [0, 0, 1, 1], [], []>} : vector<8x256xbf16>, vector<256x512xbf16>, vector<8x512xf32> -> vector<8x512xf32>
    %c21 = arith.constant 21 : index
    %c0_112 = arith.constant 0 : index
    %291 = vector.load %arg4[%c21, %c0_112] : memref<22x512xf32, #tpu.memory_space<vmem>>, vector<1x512xf32>
    %292 = vector.broadcast %291 : vector<1x512xf32> to vector<8x512xf32>
    %293 = arith.addf %290, %292 : vector<8x512xf32>
    %c0_113 = arith.constant 0 : index
    %c0_114 = arith.constant 0 : index
    %294 = vector.load %arg6[%c0_113, %c0_114] : memref<8x512xf32, #tpu.memory_space<vmem>>, vector<8x512xf32>
    tpu.vector_store %arg6[%c0_113, %c0_114], %293 {strides = array<i32>} : memref<8x512xf32, #tpu.memory_space<vmem>>, vector<8x512xf32>,
    return
  }
}

</mosaic_0001>

<llo_original>
// kernel: forward.1
$region0: #{forward.1}
  #allocation0 [shape = 'u32[]', space=smem, size = 0x4, offset = 0x4, fixed_abs, tag = 'smem constant byte address 0x4 - core index']
  #allocation1 [shape = 'u32[144,128]{1,0:T(1,128)}', space=vmem, size = 0x12000, scoped, tag = 'internal scratch']
  %s0 = inlined_call_operand.vmem [shape: f32[8,512], index: 0, kind: input, shape index: {}]
  %s1 = inlined_call_operand.hbm [shape: bf16[1280,128], index: 1, kind: input, shape index: {}]
  %s2 = inlined_call_operand.hbm [shape: bf16[640,256], index: 2, kind: input, shape index: {}]
  %s3 = inlined_call_operand.hbm [shape: bf16[256,512], index: 3, kind: input, shape index: {}]
  %s4 = inlined_call_operand.hbm [shape: f32[22,512], index: 4, kind: input, shape index: {}]
  %s5 = inlined_call_operand.hbm [shape: f32[8,128], index: 5, kind: output, shape index: {0}]
  %s6 = inlined_call_operand.hbm [shape: f32[8,512], index: 6, kind: output, shape index: {1}]
  %7 = xla_tuple %s5, %s6
  %s8 = sld [smem:[#allocation0]]
  $region54: #{forward.1} parent=0
    _
  %s10 = ssub.s32 1, %s8
  %s11 = scalar_select 0, %s10, %s8
  $region1: #{forward.1} parent=0
    #allocation2 [shape = 'u8[327680]{0}', space=vmem, size = 0x50000, scoped, tag = 'input window, operand 1, single buffered']
    #allocation3 [shape = 's32[1]{0}', space=sflag, size = 0x4, scoped, tag = 'scoped memory for forward.1']
    #allocation4 [shape = 's32[1]{0}', space=sflag, size = 0x4, scoped, tag = 'scoped memory for forward.1']
    #allocation5 [shape = 'u8[327680]{0}', space=vmem, size = 0x50000, scoped, tag = 'input window, operand 2, single buffered']
    #allocation6 [shape = 's32[1]{0}', space=sflag, size = 0x4, scoped, tag = 'scoped memory for forward.1']
    #allocation7 [shape = 'u8[262144]{0}', space=vmem, size = 0x40000, scoped, tag = 'input window, operand 3, single buffered']
    #allocation8 [shape = 'u8[49152]{0}', space=vmem, size = 0xc000, scoped, tag = 'input window, operand 4, single buffered']
    #allocation9 [shape = 's32[1]{0}', space=sflag, size = 0x4, scoped, tag = 'scoped memory for forward.1']
    #allocation10 [shape = 'u8[4096]{0}', space=vmem, size = 0x1000, scoped, tag = 'output window, operand 0, single buffered']
    #allocation11 [shape = 'u8[16384]{0}', space=vmem, size = 0x4000, scoped, tag = 'output window, operand 1, single buffered']
    #allocation12 [shape = 's32[1]{0}', space=sflag, size = 0x4, scoped, tag = 'scoped memory for forward.1']
    %12 = vsyncpa [#allocation3], 0
    %13 = vsyncpa [#allocation6], 0
    %14 = vsyncpa [#allocation9], 0
    %15 = vsyncpa [#allocation4], 0
    %16 = vsyncpa [#allocation12], 0
    // Predicated region
    $region2: #{forward.1} parent=1 // pred_check
      _
    $region3: #{forward.1} parent=1 // pred_check_branch
      %18 = sbr.rel (0) target = $region5
    $region4: #{forward.1} parent=1 // pred_region
      _
    $region5: #{forward.1} parent=1 // pred_fallthru
      _
    // Predicated region
    $region6: #{forward.1} parent=1 // pred_check
      _
    $region7: #{forward.1} parent=1 // pred_check_branch
      %20 = sbr.rel (0) target = $region9
    $region8: #{forward.1} parent=1 // pred_region
      %s22 = ssub.s32 10240, 10240
      %23 = vsyncadd [#allocation3], %s22
      %s24 = sshll.u32 [#allocation2], 4
      %s25 = int_to_ptr.vmem [resolvable:$true] %s24
      %30 = dma.hbm_to_vmem [thread:$0]  %s1, 10240, %s25, [#allocation3], 64, 64, 4
    $region9: #{forward.1} parent=1 // pred_fallthru
      _
    // Predicated region
    $region10: #{forward.1} parent=1 // pred_check
      _
    $region11: #{forward.1} parent=1 // pred_check_branch
      %32 = sbr.rel (0) target = $region13
    $region12: #{forward.1} parent=1 // pred_region
      %s34 = ssub.s32 10240, 10240
      %35 = vsyncadd [#allocation6], %s34
      %s36 = sshll.u32 [#allocation5], 4
      %s37 = int_to_ptr.vmem [resolvable:$true] %s36
      %42 = dma.hbm_to_vmem [thread:$0]  %s2, 10240, %s37, [#allocation6], 128, 128, 8
    $region13: #{forward.1} parent=1 // pred_fallthru
      _
    // Predicated region
    $region14: #{forward.1} parent=1 // pred_check
      _
    $region15: #{forward.1} parent=1 // pred_check_branch
      %44 = sbr.rel (0) target = $region17
    $region16: #{forward.1} parent=1 // pred_region
      %s46 = ssub.s32 8192, 8192
      %47 = vsyncadd [#allocation6], %s46
      %s48 = sshll.u32 [#allocation7], 4
      %s49 = int_to_ptr.vmem [resolvable:$true] %s48
      %54 = dma.hbm_to_vmem [thread:$0]  %s3, 8192, %s49, [#allocation6], 256, 256, 16
    $region17: #{forward.1} parent=1 // pred_fallthru
      _
    // Predicated region
    $region18: #{forward.1} parent=1 // pred_check
      _
    $region19: #{forward.1} parent=1 // pred_check_branch
      %56 = sbr.rel (0) target = $region21
    $region20: #{forward.1} parent=1 // pred_region
      %s58 = ssub.s32 1536, 1536
      %59 = vsyncadd [#allocation9], %s58
      %s60 = sshll.u32 [#allocation8], 4
      %s61 = int_to_ptr.vmem [resolvable:$true] %s60
      %66 = dma.hbm_to_vmem [thread:$0]  %s4, 1536, %s61, [#allocation9], 512, 512, 32
    $region21: #{forward.1} parent=1 // pred_fallthru
      _
    // Predicated region
    $region22: #{forward.1} parent=1 // pred_check
      _
    $region23: #{forward.1} parent=1 // pred_check_branch
      %68 = sbr.rel (0) target = $region25
    $region24: #{forward.1} parent=1 // pred_region
      %69 = dma.done [#allocation3], 10240
    $region25: #{forward.1} parent=1 // pred_fallthru
      _
    // Predicated region
    $region26: #{forward.1} parent=1 // pred_check
      _
    $region27: #{forward.1} parent=1 // pred_check_branch
      %71 = sbr.rel (0) target = $region29
    $region28: #{forward.1} parent=1 // pred_region
      %72 = dma.done [#allocation6], 10240
    $region29: #{forward.1} parent=1 // pred_fallthru
      _
    // Predicated region
    $region30: #{forward.1} parent=1 // pred_check
      _
    $region31: #{forward.1} parent=1 // pred_check_branch
      %74 = sbr.rel (0) target = $region33
    $region32: #{forward.1} parent=1 // pred_region
      %75 = dma.done [#allocation6], 8192
    $region33: #{forward.1} parent=1 // pred_fallthru
      _
    // Predicated region
    $region34: #{forward.1} parent=1 // pred_check
      _
    $region35: #{forward.1} parent=1 // pred_check_branch
      %77 = sbr.rel (0) target = $region37
    $region36: #{forward.1} parent=1 // pred_region
      %78 = dma.done [#allocation9], 1536
    $region37: #{forward.1} parent=1 // pred_fallthru
      _
    %v80 = vld [vmem:[%s0] sm:$0xff]
    %v81 = vld [vmem:[%s0 + $0x8] sm:$0xff]
    %v82 = vld [vmem:[%s0 + $0x10] sm:$0xff]
    %v83 = vld [vmem:[%s0 + $0x18] sm:$0xff]
    %v84 = vld [vmem:[#allocation5] sm:$0xff]
    %v85 = vld [vmem:[#allocation5 + $0x8] sm:$0xff]
    %v86 = vld [vmem:[#allocation5 + $0x10] sm:$0xff]
    %v87 = vld [vmem:[#allocation5 + $0x18] sm:$0xff]
    %v88 = vld [vmem:[#allocation5 + $0x20] sm:$0xff]
    %v89 = vld [vmem:[#allocation5 + $0x28] sm:$0xff]
    %v90 = vld [vmem:[#allocation5 + $0x30] sm:$0xff]
    %v91 = vld [vmem:[#allocation5 + $0x38] sm:$0xff]
    %v92 = vld [vmem:[#allocation5 + $0x40] sm:$0xff]
    %v93 = vld [vmem:[#allocation5 + $0x48] sm:$0xff]
    %v94 = vld [vmem:[#allocation5 + $0x50] sm:$0xff]
    %v95 = vld [vmem:[#allocation5 + $0x58] sm:$0xff]
    %v96 = vld [vmem:[#allocation5 + $0x60] sm:$0xff]
    %v97 = vld [vmem:[#allocation5 + $0x68] sm:$0xff]
    %v98 = vld [vmem:[#allocation5 + $0x70] sm:$0xff]
    %v99 = vld [vmem:[#allocation5 + $0x78] sm:$0xff]
    %v100 = vld [vmem:[#allocation5 + $0x80] sm:$0xff]
    %v101 = vld [vmem:[#allocation5 + $0x88] sm:$0xff]
    %v102 = vld [vmem:[#allocation5 + $0x90] sm:$0xff]
    %v103 = vld [vmem:[#allocation5 + $0x98] sm:$0xff]
    %v104 = vld [vmem:[#allocation5 + $0xa0] sm:$0xff]
    %v105 = vld [vmem:[#allocation5 + $0xa8] sm:$0xff]
    %v106 = vld [vmem:[#allocation5 + $0xb0] sm:$0xff]
    %v107 = vld [vmem:[#allocation5 + $0xb8] sm:$0xff]
    %v108 = vld [vmem:[#allocation5 + $0xc0] sm:$0xff]
    %v109 = vld [vmem:[#allocation5 + $0xc8] sm:$0xff]
    %v110 = vld [vmem:[#allocation5 + $0xd0] sm:$0xff]
    %v111 = vld [vmem:[#allocation5 + $0xd8] sm:$0xff]
    %v112 = vld [vmem:[#allocation5 + $0xe0] sm:$0xff]
    %v113 = vld [vmem:[#allocation5 + $0xe8] sm:$0xff]
    %v114 = vld [vmem:[#allocation5 + $0xf0] sm:$0xff]
    %v115 = vld [vmem:[#allocation5 + $0xf8] sm:$0xff]
    %v116 = vld [vmem:[#allocation5 + $0x100] sm:$0xff]
    %v117 = vld [vmem:[#allocation5 + $0x108] sm:$0xff]
    %v118 = vld [vmem:[#allocation5 + $0x110] sm:$0xff]
    %v119 = vld [vmem:[#allocation5 + $0x118] sm:$0xff]
    %v120 = vld [vmem:[#allocation5 + $0x120] sm:$0xff]
    %v121 = vld [vmem:[#allocation5 + $0x128] sm:$0xff]
    %v122 = vld [vmem:[#allocation5 + $0x130] sm:$0xff]
    %v123 = vld [vmem:[#allocation5 + $0x138] sm:$0xff]
    %v124 = vld [vmem:[#allocation5 + $0x140] sm:$0xff]
    %v125 = vld [vmem:[#allocation5 + $0x148] sm:$0xff]
    %v126 = vld [vmem:[#allocation5 + $0x150] sm:$0xff]
    %v127 = vld [vmem:[#allocation5 + $0x158] sm:$0xff]
    %v128 = vld [vmem:[#allocation5 + $0x160] sm:$0xff]
    %v129 = vld [vmem:[#allocation5 + $0x168] sm:$0xff]
    %v130 = vld [vmem:[#allocation5 + $0x170] sm:$0xff]
    %v131 = vld [vmem:[#allocation5 + $0x178] sm:$0xff]
    %v132 = vld [vmem:[#allocation5 + $0x180] sm:$0xff]
    %v133 = vld [vmem:[#allocation5 + $0x188] sm:$0xff]
    %v134 = vld [vmem:[#allocation5 + $0x190] sm:$0xff]
    %v135 = vld [vmem:[#allocation5 + $0x198] sm:$0xff]
    %v136 = vld [vmem:[#allocation5 + $0x1a0] sm:$0xff]
    %v137 = vld [vmem:[#allocation5 + $0x1a8] sm:$0xff]
    %v138 = vld [vmem:[#allocation5 + $0x1b0] sm:$0xff]
    %v139 = vld [vmem:[#allocation5 + $0x1b8] sm:$0xff]
    %v140 = vld [vmem:[#allocation5 + $0x1c0] sm:$0xff]
    %v141 = vld [vmem:[#allocation5 + $0x1c8] sm:$0xff]
    %v142 = vld [vmem:[#allocation5 + $0x1d0] sm:$0xff]
    %v143 = vld [vmem:[#allocation5 + $0x1d8] sm:$0xff]
    %v144 = vld [vmem:[#allocation5 + $0x1e0] sm:$0xff]
    %v145 = vld [vmem:[#allocation5 + $0x1e8] sm:$0xff]
    %v146 = vld [vmem:[#allocation5 + $0x1f0] sm:$0xff]
    %v147 = vld [vmem:[#allocation5 + $0x1f8] sm:$0xff]
    %v148 = vpack.c.bf16 %v80, %v80
    %v149 = vpack.c.bf16 %v81, %v81
    %v150 = vpack.c.bf16 %v82, %v82
    %v151 = vpack.c.bf16 %v83, %v83
    %v216 = vunpack.c.l.b16 %v84
    %v217 = vunpack.c.h.b16 %v84
    %v218 = vunpack.c.l.b16 %v85
    %v219 = vunpack.c.h.b16 %v85
    %v220 = vunpack.c.l.b16 %v86
    %v221 = vunpack.c.h.b16 %v86
    %v222 = vunpack.c.l.b16 %v87
    %v223 = vunpack.c.h.b16 %v87
    %v224 = vunpack.c.l.b16 %v88
    %v225 = vunpack.c.h.b16 %v88
    %v226 = vunpack.c.l.b16 %v89
    %v227 = vunpack.c.h.b16 %v89
    %v228 = vunpack.c.l.b16 %v90
    %v229 = vunpack.c.h.b16 %v90
    %v230 = vunpack.c.l.b16 %v91
    %v231 = vunpack.c.h.b16 %v91
    %v232 = vunpack.c.l.b16 %v92
    %v233 = vunpack.c.h.b16 %v92
    %v234 = vunpack.c.l.b16 %v93
    %v235 = vunpack.c.h.b16 %v93
    %v236 = vunpack.c.l.b16 %v94
    %v237 = vunpack.c.h.b16 %v94
    %v238 = vunpack.c.l.b16 %v95
    %v239 = vunpack.c.h.b16 %v95
    %v240 = vunpack.c.l.b16 %v96
    %v241 = vunpack.c.h.b16 %v96
    %v242 = vunpack.c.l.b16 %v97
    %v243 = vunpack.c.h.b16 %v97
    %v244 = vunpack.c.l.b16 %v98
    %v245 = vunpack.c.h.b16 %v98
    %v246 = vunpack.c.l.b16 %v99
    %v247 = vunpack.c.h.b16 %v99
    %v248 = vunpack.c.l.b16 %v100
    %v249 = vunpack.c.h.b16 %v100
    %v250 = vunpack.c.l.b16 %v101
    %v251 = vunpack.c.h.b16 %v101
    %v252 = vunpack.c.l.b16 %v102
    %v253 = vunpack.c.h.b16 %v102
    %v254 = vunpack.c.l.b16 %v103
    %v255 = vunpack.c.h.b16 %v103
    %v256 = vunpack.c.l.b16 %v104
    %v257 = vunpack.c.h.b16 %v104
    %v258 = vunpack.c.l.b16 %v105
    %v259 = vunpack.c.h.b16 %v105
    %v260 = vunpack.c.l.b16 %v106
    %v261 = vunpack.c.h.b16 %v106
    %v262 = vunpack.c.l.b16 %v107
    %v263 = vunpack.c.h.b16 %v107
    %v264 = vunpack.c.l.b16 %v108
    %v265 = vunpack.c.h.b16 %v108
    %v266 = vunpack.c.l.b16 %v109
    %v267 = vunpack.c.h.b16 %v109
    %v268 = vunpack.c.l.b16 %v110
    %v269 = vunpack.c.h.b16 %v110
    %v270 = vunpack.c.l.b16 %v111
    %v271 = vunpack.c.h.b16 %v111
    %v272 = vunpack.c.l.b16 %v112
    %v273 = vunpack.c.h.b16 %v112
    %v274 = vunpack.c.l.b16 %v113
    %v275 = vunpack.c.h.b16 %v113
    %v276 = vunpack.c.l.b16 %v114
    %v277 = vunpack.c.h.b16 %v114
    %v278 = vunpack.c.l.b16 %v115
    %v279 = vunpack.c.h.b16 %v115
    %v280 = vunpack.c.l.b16 %v116
    %v281 = vunpack.c.h.b16 %v116
    %v282 = vunpack.c.l.b16 %v117
    %v283 = vunpack.c.h.b16 %v117
    %v284 = vunpack.c.l.b16 %v118
    %v285 = vunpack.c.h.b16 %v118
    %v286 = vunpack.c.l.b16 %v119
    %v287 = vunpack.c.h.b16 %v119
    %v288 = vunpack.c.l.b16 %v120
    %v289 = vunpack.c.h.b16 %v120
    %v290 = vunpack.c.l.b16 %v121
    %v291 = vunpack.c.h.b16 %v121
    %v292 = vunpack.c.l.b16 %v122
    %v293 = vunpack.c.h.b16 %v122
    %v294 = vunpack.c.l.b16 %v123
    %v295 = vunpack.c.h.b16 %v123
    %v296 = vunpack.c.l.b16 %v124
    %v297 = vunpack.c.h.b16 %v124
    %v298 = vunpack.c.l.b16 %v125
    %v299 = vunpack.c.h.b16 %v125
    %v300 = vunpack.c.l.b16 %v126
    %v301 = vunpack.c.h.b16 %v126
    %v302 = vunpack.c.l.b16 %v127
    %v303 = vunpack.c.h.b16 %v127
    %v304 = vunpack.c.l.b16 %v128
    %v305 = vunpack.c.h.b16 %v128
    %v306 = vunpack.c.l.b16 %v129
    %v307 = vunpack.c.h.b16 %v129
    %v308 = vunpack.c.l.b16 %v130
    %v309 = vunpack.c.h.b16 %v130
    %v310 = vunpack.c.l.b16 %v131
    %v311 = vunpack.c.h.b16 %v131
    %v312 = vunpack.c.l.b16 %v132
    %v313 = vunpack.c.h.b16 %v132
    %v314 = vunpack.c.l.b16 %v133
    %v315 = vunpack.c.h.b16 %v133
    %v316 = vunpack.c.l.b16 %v134
    %v317 = vunpack.c.h.b16 %v134
    %v318 = vunpack.c.l.b16 %v135
    %v319 = vunpack.c.h.b16 %v135
    %v320 = vunpack.c.l.b16 %v136
    %v321 = vunpack.c.h.b16 %v136
    %v322 = vunpack.c.l.b16 %v137
    %v323 = vunpack.c.h.b16 %v137
    %v324 = vunpack.c.l.b16 %v138
    %v325 = vunpack.c.h.b16 %v138
    %v326 = vunpack.c.l.b16 %v139
    %v327 = vunpack.c.h.b16 %v139
    %v328 = vunpack.c.l.b16 %v140
    %v329 = vunpack.c.h.b16 %v140
    %v330 = vunpack.c.l.b16 %v141
    %v331 = vunpack.c.h.b16 %v141
    %v332 = vunpack.c.l.b16 %v142
    %v333 = vunpack.c.h.b16 %v142
    %v334 = vunpack.c.l.b16 %v143
    %v335 = vunpack.c.h.b16 %v143
    %v336 = vunpack.c.l.b16 %v144
    %v337 = vunpack.c.h.b16 %v144
    %v338 = vunpack.c.l.b16 %v145
    %v339 = vunpack.c.h.b16 %v145
    %v340 = vunpack.c.l.b16 %v146
    %v341 = vunpack.c.h.b16 %v146
    %v342 = vunpack.c.l.b16 %v147
    %v343 = vunpack.c.h.b16 %v147
    %v344 = vpack.c.b16 %v218, %v216
    %v345 = vpack.c.b16 %v219, %v217
    %v346 = vpack.c.b16 %v222, %v220
    %v347 = vpack.c.b16 %v223, %v221
    %v348 = vpack.c.b16 %v226, %v224
    %v349 = vpack.c.b16 %v227, %v225
    %v350 = vpack.c.b16 %v230, %v228
    %v351 = vpack.c.b16 %v231, %v229
    %v352 = vpack.c.b16 %v234, %v232
    %v353 = vpack.c.b16 %v235, %v233
    %v354 = vpack.c.b16 %v238, %v236
    %v355 = vpack.c.b16 %v239, %v237
    %v356 = vpack.c.b16 %v242, %v240
    %v357 = vpack.c.b16 %v243, %v241
    %v358 = vpack.c.b16 %v246, %v244
    %v359 = vpack.c.b16 %v247, %v245
    %v360 = vpack.c.b16 %v250, %v248
    %v361 = vpack.c.b16 %v251, %v249
    %v362 = vpack.c.b16 %v254, %v252
    %v363 = vpack.c.b16 %v255, %v253
    %v364 = vpack.c.b16 %v258, %v256
    %v365 = vpack.c.b16 %v259, %v257
    %v366 = vpack.c.b16 %v262, %v260
    %v367 = vpack.c.b16 %v263, %v261
    %v368 = vpack.c.b16 %v266, %v264
    %v369 = vpack.c.b16 %v267, %v265
    %v370 = vpack.c.b16 %v270, %v268
    %v371 = vpack.c.b16 %v271, %v269
    %v372 = vpack.c.b16 %v274, %v272
    %v373 = vpack.c.b16 %v275, %v273
    %v374 = vpack.c.b16 %v278, %v276
    %v375 = vpack.c.b16 %v279, %v277
    %v376 = vpack.c.b16 %v282, %v280
    %v377 = vpack.c.b16 %v283, %v281
    %v378 = vpack.c.b16 %v286, %v284
    %v379 = vpack.c.b16 %v287, %v285
    %v380 = vpack.c.b16 %v290, %v288
    %v381 = vpack.c.b16 %v291, %v289
    %v382 = vpack.c.b16 %v294, %v292
    %v383 = vpack.c.b16 %v295, %v293
    %v384 = vpack.c.b16 %v298, %v296
    %v385 = vpack.c.b16 %v299, %v297
    %v386 = vpack.c.b16 %v302, %v300
    %v387 = vpack.c.b16 %v303, %v301
    %v388 = vpack.c.b16 %v306, %v304
    %v389 = vpack.c.b16 %v307, %v305
    %v390 = vpack.c.b16 %v310, %v308
    %v391 = vpack.c.b16 %v311, %v309
    %v392 = vpack.c.b16 %v314, %v312
    %v393 = vpack.c.b16 %v315, %v313
    %v394 = vpack.c.b16 %v318, %v316
    %v395 = vpack.c.b16 %v319, %v317
    %v396 = vpack.c.b16 %v322, %v320
    %v397 = vpack.c.b16 %v323, %v321
    %v398 = vpack.c.b16 %v326, %v324
    %v399 = vpack.c.b16 %v327, %v325
    %v400 = vpack.c.b16 %v330, %v328
    %v401 = vpack.c.b16 %v331, %v329
    %v402 = vpack.c.b16 %v334, %v332
    %v403 = vpack.c.b16 %v335, %v333
    %v404 = vpack.c.b16 %v338, %v336
    %v405 = vpack.c.b16 %v339, %v337
    %v406 = vpack.c.b16 %v342, %v340
    %v407 = vpack.c.b16 %v343, %v341
    %472 = vmatprep.subr.bf16.mxu0 %v345
    %473 = vmatpush1.bf16.msra.mxu0 %v344
    %474 = vmatprep.subr.bf16.mxu0 %v347
    %475 = vmatpush1.bf16.msra.mxu0 %v346
    %476 = vmatprep.subr.bf16.mxu0 %v349
    %477 = vmatpush1.bf16.msra.mxu0 %v348
    %478 = vmatprep.subr.bf16.mxu0 %v351
    %479 = vmatpush1.bf16.msra.mxu0 %v350
    %480 = vmatprep.subr.bf16.mxu0 %v353
    %481 = vmatpush1.bf16.msra.mxu0 %v352
    %482 = vmatprep.subr.bf16.mxu0 %v355
    %483 = vmatpush1.bf16.msra.mxu0 %v354
    %484 = vmatprep.subr.bf16.mxu0 %v357
    %485 = vmatpush1.bf16.msra.mxu0 %v356
    %486 = vmatprep.subr.bf16.mxu0 %v359
    %487 = vmatpush1.bf16.msra.mxu0 %v358
    %488 = vmatprep.subr.bf16.mxu0 %v361
    %489 = vmatpush1.bf16.msra.mxu0 %v360
    %490 = vmatprep.subr.bf16.mxu0 %v363
    %491 = vmatpush1.bf16.msra.mxu0 %v362
    %492 = vmatprep.subr.bf16.mxu0 %v365
    %493 = vmatpush1.bf16.msra.mxu0 %v364
    %494 = vmatprep.subr.bf16.mxu0 %v367
    %495 = vmatpush1.bf16.msra.mxu0 %v366
    %496 = vmatprep.subr.bf16.mxu0 %v369
    %497 = vmatpush1.bf16.msra.mxu0 %v368
    %498 = vmatprep.subr.bf16.mxu0 %v371
    %499 = vmatpush1.bf16.msra.mxu0 %v370
    %500 = vmatprep.subr.bf16.mxu0 %v373
    %501 = vmatpush1.bf16.msra.mxu0 %v372
    %502 = vmatprep.subr.bf16.mxu0 %v375
    %503 = vmatpush1.bf16.msra.mxu0 %v374
    %504 = vmatprep.mubr.bf16.mxu0 %v149
    %505 = vmatmul.mubr.bf16.gmra.mrb[0].mxu0 %v148
    %v506 = vpop.f32.mrb[0].mxu0
    %v507 = vadd.f32 0.0, %v506
    %v508 = vpop.f32.mrb[0].mxu0
    %v509 = vadd.f32 0.0, %v508
    %v510 = vpop.f32.mrb[0].mxu0
    %v511 = vpop.f32.mrb[0].mxu0
    %512 = vdwg.mxu0
    %513 = vmatprep.subr.bf16.mxu0 %v377
    %514 = vmatpush1.bf16.msra.mxu0 %v376
    %515 = vmatprep.subr.bf16.mxu0 %v379
    %516 = vmatpush1.bf16.msra.mxu0 %v378
    %517 = vmatprep.subr.bf16.mxu0 %v381
    %518 = vmatpush1.bf16.msra.mxu0 %v380
    %519 = vmatprep.subr.bf16.mxu0 %v383
    %520 = vmatpush1.bf16.msra.mxu0 %v382
    %521 = vmatprep.subr.bf16.mxu0 %v385
    %522 = vmatpush1.bf16.msra.mxu0 %v384
    %523 = vmatprep.subr.bf16.mxu0 %v387
    %524 = vmatpush1.bf16.msra.mxu0 %v386
    %525 = vmatprep.subr.bf16.mxu0 %v389
    %526 = vmatpush1.bf16.msra.mxu0 %v388
    %527 = vmatprep.subr.bf16.mxu0 %v391
    %528 = vmatpush1.bf16.msra.mxu0 %v390
    %529 = vmatprep.subr.bf16.mxu0 %v393
    %530 = vmatpush1.bf16.msra.mxu0 %v392
    %531 = vmatprep.subr.bf16.mxu0 %v395
    %532 = vmatpush1.bf16.msra.mxu0 %v394
    %533 = vmatprep.subr.bf16.mxu0 %v397
    %534 = vmatpush1.bf16.msra.mxu0 %v396
    %535 = vmatprep.subr.bf16.mxu0 %v399
    %536 = vmatpush1.bf16.msra.mxu0 %v398
    %537 = vmatprep.subr.bf16.mxu0 %v401
    %538 = vmatpush1.bf16.msra.mxu0 %v400
    %539 = vmatprep.subr.bf16.mxu0 %v403
    %540 = vmatpush1.bf16.msra.mxu0 %v402
    %541 = vmatprep.subr.bf16.mxu0 %v405
    %542 = vmatpush1.bf16.msra.mxu0 %v404
    %543 = vmatprep.subr.bf16.mxu0 %v407
    %544 = vmatpush1.bf16.msra.mxu0 %v406
    %545 = vmatprep.mubr.bf16.mxu0 %v151
    %546 = vmatmul.mubr.bf16.gmra.mrb[0].mxu0 %v150
    %v547 = vpop.f32.mrb[0].mxu0
    %v548 = vadd.f32 %v507, %v547
    %v549 = vpop.f32.mrb[0].mxu0
    %v550 = vadd.f32 %v509, %v549
    %v551 = vpop.f32.mrb[0].mxu0
    %v552 = vpop.f32.mrb[0].mxu0
    %553 = vdwg.mxu0
    %v554 = vld [vmem:[#allocation8] ss:$8 sm:$0x3]
    %s555 = scalar_lea.vmem [#allocation8], 1
    %v556 = vld [vmem:[%s555] ss:$8 sm:$0x3]
    %v557 = vrot.slane %v548, 4
    %v558 = vadd.f32 %v548, %v557
    %v559 = vrot.slane %v558, 2
    %v560 = vadd.f32 %v558, %v559
    %v561 = vrot.slane %v560, 1
    %v562 = vadd.f32 %v560, %v561
    %v563 = vrot.slane %v550, 4
    %v564 = vadd.f32 %v550, %v563
    %v565 = vrot.slane %v564, 2
    %v566 = vadd.f32 %v564, %v565
    %v567 = vrot.slane %v566, 1
    %v568 = vadd.f32 %v566, %v567
    %v569 = vrcp.pop 8.0
    %v570 = vmul.f32 %v562, %v569
    %v571 = vmul.f32 %v568, %v569
    %v572 = vsub.f32 %v548, %v570
    %v573 = vsub.f32 %v550, %v571
    %v574 = vmul.f32 %v572, %v572
    %v575 = vmul.f32 %v573, %v573
    %v576 = vrot.slane %v574, 4
    %v577 = vadd.f32 %v574, %v576
    %v578 = vrot.slane %v577, 2
    %v579 = vadd.f32 %v577, %v578
    %v580 = vrot.slane %v579, 1
    %v581 = vadd.f32 %v579, %v580
    %v582 = vrot.slane %v575, 4
    %v583 = vadd.f32 %v575, %v582
    %v584 = vrot.slane %v583, 2
    %v585 = vadd.f32 %v583, %v584
    %v586 = vrot.slane %v585, 1
    %v587 = vadd.f32 %v585, %v586
    %v588 = vmul.f32 %v581, %v569
    %v589 = vmul.f32 %v587, %v569
    %v590 = vadd.f32 %v588, 1e-05
    %v591 = vadd.f32 %v589, 1e-05
    %v592 = vrsqrt.pop %v590
    %v593 = vrsqrt.pop %v591
    %v596 = vcombine.low %v592, %v593
    %v598 = vunpack.c.l.s4 1966171168
    %v599 = vunpack.c.0.s8 %v598
    %v600 = vlaneseq
    %v601 = vshrl.u32 %v600, 7
    %v602 = vsub.s32 %v599, %v601
    %v603 = vrot.slane %v596, %v602
    %v605 = vunpack.c.l.s4 1966171168
    %v606 = vunpack.c.0.s8 %v605
    %v607 = vlaneseq
    %v608 = vshrl.u32 %v607, 7
    %v609 = vsub.s32 %v606, %v608
    %v610 = vrot.slane %v603, %v609
    %v612 = vmul.f32 %v554, %v610
    %v614 = vlaneseq
    %v615 = vshrl.u32 %v614, 7
    %v616 = vsub.s32 0, %v615
    %v617 = vrot.slane %v612, %v616
    %v618 = vlaneseq
    %v619 = vshrl.u32 %v618, 7
    %v620 = vsub.s32 1, %v619
    %v621 = vrot.slane %v612, %v620
    %v624 = vmul.f32 %v570, %v617
    %v625 = vmul.f32 %v571, %v621
    %v628 = vcombine.low %v624, %v625
    %v630 = vunpack.c.l.s4 1966171168
    %v631 = vunpack.c.0.s8 %v630
    %v632 = vlaneseq
    %v633 = vshrl.u32 %v632, 7
    %v634 = vsub.s32 %v631, %v633
    %v635 = vrot.slane %v628, %v634
    %v637 = vunpack.c.l.s4 1966171168
    %v638 = vunpack.c.0.s8 %v637
    %v639 = vlaneseq
    %v640 = vshrl.u32 %v639, 7
    %v641 = vsub.s32 %v638, %v640
    %v642 = vrot.slane %v635, %v641
    %v644 = vsub.f32 %v556, %v642
    %v645 = vmul.f32 %v548, %v617
    %v646 = vmul.f32 %v550, %v621
    %v648 = vlaneseq
    %v649 = vshrl.u32 %v648, 7
    %v650 = vsub.s32 0, %v649
    %v651 = vrot.slane %v644, %v650
    %v652 = vlaneseq
    %v653 = vshrl.u32 %v652, 7
    %v654 = vsub.s32 1, %v653
    %v655 = vrot.slane %v644, %v654
    %v658 = vadd.f32 %v645, %v651
    %v659 = vadd.f32 %v646, %v655
    %v660 = vmax.f32 %v658, 0.0
    %v661 = vmax.f32 %v659, 0.0
    %v662 = vld [vmem:[#allocation2] sm:$0xf]
    %v663 = vld [vmem:[#allocation2 + $0x4] sm:$0xf]
    %v664 = vld [vmem:[#allocation2 + $0x8] sm:$0xf]
    %v665 = vld [vmem:[#allocation2 + $0xc] sm:$0xf]
    %v666 = vld [vmem:[#allocation2 + $0x10] sm:$0xf]
    %v667 = vld [vmem:[#allocation2 + $0x14] sm:$0xf]
    %v668 = vld [vmem:[#allocation2 + $0x18] sm:$0xf]
    %v669 = vld [vmem:[#allocation2 + $0x1c] sm:$0xf]
    %v670 = vld [vmem:[#allocation2 + $0x20] sm:$0xf]
    %v671 = vld [vmem:[#allocation2 + $0x24] sm:$0xf]
    %v672 = vld [vmem:[#allocation2 + $0x28] sm:$0xf]
    %v673 = vld [vmem:[#allocation2 + $0x2c] sm:$0xf]
    %v674 = vld [vmem:[#allocation2 + $0x30] sm:$0xf]
    %v675 = vld [vmem:[#allocation2 + $0x34] sm:$0xf]
    %v676 = vld [vmem:[#allocation2 + $0x38] sm:$0xf]
    %v677 = vld [vmem:[#allocation2 + $0x3c] sm:$0xf]
    %v678 = vld [vmem:[#allocation2 + $0x40] sm:$0xf]
    %v679 = vld [vmem:[#allocation2 + $0x44] sm:$0xf]
    %v680 = vld [vmem:[#allocation2 + $0x48] sm:$0xf]
    %v681 = vld [vmem:[#allocation2 + $0x4c] sm:$0xf]
    %v682 = vld [vmem:[#allocation2 + $0x50] sm:$0xf]
    %v683 = vld [vmem:[#allocation2 + $0x54] sm:$0xf]
    %v684 = vld [vmem:[#allocation2 + $0x58] sm:$0xf]
    %v685 = vld [vmem:[#allocation2 + $0x5c] sm:$0xf]
    %v686 = vld [vmem:[#allocation2 + $0x60] sm:$0xf]
    %v687 = vld [vmem:[#allocation2 + $0x64] sm:$0xf]
    %v688 = vld [vmem:[#allocation2 + $0x68] sm:$0xf]
    %v689 = vld [vmem:[#allocation2 + $0x6c] sm:$0xf]
    %v690 = vld [vmem:[#allocation2 + $0x70] sm:$0xf]
    %v691 = vld [vmem:[#allocation2 + $0x74] sm:$0xf]
    %v692 = vld [vmem:[#allocation2 + $0x78] sm:$0xf]
    %v693 = vld [vmem:[#allocation2 + $0x7c] sm:$0xf]
    %v694 = vpack.c.bf16 %v660, %v660
    %v695 = vpack.c.bf16 %v661, %v661
    %v728 = vunpack.c.l.b16 %v662
    %v729 = vunpack.c.l.b16 %v663
    %v730 = vunpack.c.l.b16 %v664
    %v731 = vunpack.c.l.b16 %v665
    %v732 = vunpack.c.l.b16 %v666
    %v733 = vunpack.c.l.b16 %v667
    %v734 = vunpack.c.l.b16 %v668
    %v735 = vunpack.c.l.b16 %v669
    %v736 = vunpack.c.l.b16 %v670
    %v737 = vunpack.c.l.b16 %v671
    %v738 = vunpack.c.l.b16 %v672
    %v739 = vunpack.c.l.b16 %v673
    %v740 = vunpack.c.l.b16 %v674
    %v741 = vunpack.c.l.b16 %v675
    %v742 = vunpack.c.l.b16 %v676
    %v743 = vunpack.c.l.b16 %v677
    %v744 = vunpack.c.l.b16 %v678
    %v745 = vunpack.c.l.b16 %v679
    %v746 = vunpack.c.l.b16 %v680
    %v747 = vunpack.c.l.b16 %v681
    %v748 = vunpack.c.l.b16 %v682
    %v749 = vunpack.c.l.b16 %v683
    %v750 = vunpack.c.l.b16 %v684
    %v751 = vunpack.c.l.b16 %v685
    %v752 = vunpack.c.l.b16 %v686
    %v753 = vunpack.c.l.b16 %v687
    %v754 = vunpack.c.l.b16 %v688
    %v755 = vunpack.c.l.b16 %v689
    %v756 = vunpack.c.l.b16 %v690
    %v757 = vunpack.c.l.b16 %v691
    %v758 = vunpack.c.l.b16 %v692
    %v759 = vunpack.c.l.b16 %v693
    %v760 = vpack.c.b16 %v729, %v728
    %v761 = vpack.c.b16 %v731, %v730
    %v762 = vpack.c.b16 %v733, %v732
    %v763 = vpack.c.b16 %v735, %v734
    %v764 = vpack.c.b16 %v737, %v736
    %v765 = vpack.c.b16 %v739, %v738
    %v766 = vpack.c.b16 %v741, %v740
    %v767 = vpack.c.b16 %v743, %v742
    %v768 = vpack.c.b16 %v745, %v744
    %v769 = vpack.c.b16 %v747, %v746
    %v770 = vpack.c.b16 %v749, %v748
    %v771 = vpack.c.b16 %v751, %v750
    %v772 = vpack.c.b16 %v753, %v752
    %v773 = vpack.c.b16 %v755, %v754
    %v774 = vpack.c.b16 %v757, %v756
    %v775 = vpack.c.b16 %v759, %v758
    %792 = vmatprep.subr.bf16.mxu0 0
    %793 = vmatpush1.bf16.msra.mxu0 %v760
    %794 = vmatprep.subr.bf16.mxu0 0
    %795 = vmatpush1.bf16.msra.mxu0 %v761
    %796 = vmatprep.subr.bf16.mxu0 0
    %797 = vmatpush1.bf16.msra.mxu0 %v762
    %798 = vmatprep.subr.bf16.mxu0 0
    %799 = vmatpush1.bf16.msra.mxu0 %v763
    %800 = vmatprep.subr.bf16.mxu0 0
    %801 = vmatpush1.bf16.msra.mxu0 %v764
    %802 = vmatprep.subr.bf16.mxu0 0
    %803 = vmatpush1.bf16.msra.mxu0 %v765
    %804 = vmatprep.subr.bf16.mxu0 0
    %805 = vmatpush1.bf16.msra.mxu0 %v766
    %806 = vmatprep.subr.bf16.mxu0 0
    %807 = vmatpush1.bf16.msra.mxu0 %v767
    %808 = vmatprep.subr.bf16.mxu0 0
    %809 = vmatpush1.bf16.msra.mxu0 %v768
    %810 = vmatprep.subr.bf16.mxu0 0
    %811 = vmatpush1.bf16.msra.mxu0 %v769
    %812 = vmatprep.subr.bf16.mxu0 0
    %813 = vmatpush1.bf16.msra.mxu0 %v770
    %814 = vmatprep.subr.bf16.mxu0 0
    %815 = vmatpush1.bf16.msra.mxu0 %v771
    %816 = vmatprep.subr.bf16.mxu0 0
    %817 = vmatpush1.bf16.msra.mxu0 %v772
    %818 = vmatprep.subr.bf16.mxu0 0
    %819 = vmatpush1.bf16.msra.mxu0 %v773
    %820 = vmatprep.subr.bf16.mxu0 0
    %821 = vmatpush1.bf16.msra.mxu0 %v774
    %822 = vmatprep.subr.bf16.mxu0 0
    %823 = vmatpush1.bf16.msra.mxu0 %v775
    %824 = vmatprep.mubr.bf16.mxu0 %v695
    %825 = vmatmul.mubr.bf16.gmra.mrb[0].mxu0 %v694
    %v826 = vpop.f32.mrb[0].mxu0
    %v827 = vadd.f32 0.0, %v826
    %v828 = vpop.f32.mrb[0].mxu0
    %v829 = vpop.f32.mrb[0].mxu0
    %v830 = vpop.f32.mrb[0].mxu0
    %831 = vdwg.mxu0
    %v832 = vld [vmem:[#allocation8 + $0x2] ss:$0 sm:$0xff]
    %v833 = vld [vmem:[#allocation8 + $0x3] ss:$0 sm:$0xff]
    %v834 = vrot.slane %v827, 4
    %v835 = vadd.f32 %v827, %v834
    %v836 = vrot.slane %v835, 2
    %v837 = vadd.f32 %v835, %v836
    %v838 = vrot.slane %v837, 1
    %v839 = vadd.f32 %v837, %v838
    %v840 = vmul.f32 %v839, %v569
    %v841 = vsub.f32 %v827, %v840
    %v842 = vmul.f32 %v841, %v841
    %v843 = vrot.slane %v842, 4
    %v844 = vadd.f32 %v842, %v843
    %v845 = vrot.slane %v844, 2
    %v846 = vadd.f32 %v844, %v845
    %v847 = vrot.slane %v846, 1
    %v848 = vadd.f32 %v846, %v847
    %v849 = vmul.f32 %v848, %v569
    %v850 = vadd.f32 %v849, 1e-05
    %v851 = vrsqrt.pop %v850
    %v852 = vmul.f32 %v832, %v851
    %v853 = vmul.f32 %v840, %v852
    %v854 = vsub.f32 %v833, %v853
    %v855 = vmul.f32 %v827, %v852
    %v856 = vadd.f32 %v855, %v854
    %v857 = vmax.f32 %v856, 0.0
    %v858 = vld [vmem:[#allocation2 + $0x80] sm:$0xf]
    %v859 = vld [vmem:[#allocation2 + $0x84] sm:$0xf]
    %v860 = vld [vmem:[#allocation2 + $0x88] sm:$0xf]
    %v861 = vld [vmem:[#allocation2 + $0x8c] sm:$0xf]
    %v862 = vld [vmem:[#allocation2 + $0x90] sm:$0xf]
    %v863 = vld [vmem:[#allocation2 + $0x94] sm:$0xf]
    %v864 = vld [vmem:[#allocation2 + $0x98] sm:$0xf]
    %v865 = vld [vmem:[#allocation2 + $0x9c] sm:$0xf]
    %v866 = vld [vmem:[#allocation2 + $0xa0] sm:$0xf]
    %v867 = vld [vmem:[#allocation2 + $0xa4] sm:$0xf]
    %v868 = vld [vmem:[#allocation2 + $0xa8] sm:$0xf]
    %v869 = vld [vmem:[#allocation2 + $0xac] sm:$0xf]
    %v870 = vld [vmem:[#allocation2 + $0xb0] sm:$0xf]
    %v871 = vld [vmem:[#allocation2 + $0xb4] sm:$0xf]
    %v872 = vld [vmem:[#allocation2 + $0xb8] sm:$0xf]
    %v873 = vld [vmem:[#allocation2 + $0xbc] sm:$0xf]
    %v874 = vpack.c.bf16 %v857, %v857
    %v891 = vunpack.c.l.b16 %v858
    %v892 = vunpack.c.l.b16 %v859
    %v893 = vunpack.c.l.b16 %v860
    %v894 = vunpack.c.l.b16 %v861
    %v895 = vunpack.c.l.b16 %v862
    %v896 = vunpack.c.l.b16 %v863
    %v897 = vunpack.c.l.b16 %v864
    %v898 = vunpack.c.l.b16 %v865
    %v899 = vunpack.c.l.b16 %v866
    %v900 = vunpack.c.l.b16 %v867
    %v901 = vunpack.c.l.b16 %v868
    %v902 = vunpack.c.l.b16 %v869
    %v903 = vunpack.c.l.b16 %v870
    %v904 = vunpack.c.l.b16 %v871
    %v905 = vunpack.c.l.b16 %v872
    %v906 = vunpack.c.l.b16 %v873
    %v907 = vpack.c.b16 %v892, %v891
    %v908 = vpack.c.b16 %v894, %v893
    %v909 = vpack.c.b16 %v896, %v895
    %v910 = vpack.c.b16 %v898, %v897
    %v911 = vpack.c.b16 %v900, %v899
    %v912 = vpack.c.b16 %v902, %v901
    %v913 = vpack.c.b16 %v904, %v903
    %v914 = vpack.c.b16 %v906, %v905
    %923 = vmatprep.subr.bf16.mxu0 0
    %924 = vmatpush1.bf16.msra.mxu0 %v907
    %925 = vmatprep.subr.bf16.mxu0 0
    %926 = vmatpush1.bf16.msra.mxu0 %v908
    %927 = vmatprep.subr.bf16.mxu0 0
    %928 = vmatpush1.bf16.msra.mxu0 %v909
    %929 = vmatprep.subr.bf16.mxu0 0
    %930 = vmatpush1.bf16.msra.mxu0 %v910
    %931 = vmatprep.subr.bf16.mxu0 0
    %932 = vmatpush1.bf16.msra.mxu0 %v911
    %933 = vmatprep.subr.bf16.mxu0 0
    %934 = vmatpush1.bf16.msra.mxu0 %v912
    %935 = vmatprep.subr.bf16.mxu0 0
    %936 = vmatpush1.bf16.msra.mxu0 %v913
    %937 = vmatprep.subr.bf16.mxu0 0
    %938 = vmatpush1.bf16.msra.mxu0 %v914
    %939 = vmatprep.subr.bf16.mxu0 0
    %940 = vmatpush1.bf16.msra.mxu0 0
    %941 = vmatprep.subr.bf16.mxu0 0
    %942 = vmatpush1.bf16.msra.mxu0 0
    %943 = vmatprep.subr.bf16.mxu0 0
    %944 = vmatpush1.bf16.msra.mxu0 0
    %945 = vmatprep.subr.bf16.mxu0 0
    %946 = vmatpush1.bf16.msra.mxu0 0
    %947 = vmatprep.subr.bf16.mxu0 0
    %948 = vmatpush1.bf16.msra.mxu0 0
    %949 = vmatprep.subr.bf16.mxu0 0
    %950 = vmatpush1.bf16.msra.mxu0 0
    %951 = vmatprep.subr.bf16.mxu0 0
    %952 = vmatpush1.bf16.msra.mxu0 0
    %953 = vmatprep.subr.bf16.mxu0 0
    %954 = vmatpush1.bf16.msra.mxu0 0
    %955 = vmatprep.mubr.bf16.mxu0 0
    %956 = vmatmul.mubr.bf16.gmra.mrb[0].mxu0 %v874
    %v957 = vpop.f32.mrb[0].mxu0
    %v958 = vadd.f32 0.0, %v957
    %v959 = vpop.f32.mrb[0].mxu0
    %v960 = vpop.f32.mrb[0].mxu0
    %v961 = vpop.f32.mrb[0].mxu0
    %962 = vdwg.mxu0
    %v963 = vld [vmem:[#allocation8 + $0x4] ss:$0 sm:$0xff]
    %v964 = vld [vmem:[#allocation8 + $0x5] ss:$0 sm:$0xff]
    %v965 = vrot.slane %v958, 4
    %v966 = vadd.f32 %v958, %v965
    %v967 = vrot.slane %v966, 2
    %v968 = vadd.f32 %v966, %v967
    %v969 = vrot.slane %v968, 1
    %v970 = vadd.f32 %v968, %v969
    %v971 = vmul.f32 %v970, %v569
    %v972 = vsub.f32 %v958, %v971
    %v973 = vmul.f32 %v972, %v972
    %v974 = vrot.slane %v973, 4
    %v975 = vadd.f32 %v973, %v974
    %v976 = vrot.slane %v975, 2
    %v977 = vadd.f32 %v975, %v976
    %v978 = vrot.slane %v977, 1
    %v979 = vadd.f32 %v977, %v978
    %v980 = vmul.f32 %v979, %v569
    %v981 = vadd.f32 %v980, 1e-05
    %v982 = vrsqrt.pop %v981
    %v983 = vmul.f32 %v963, %v982
    %v984 = vmul.f32 %v971, %v983
    %v985 = vsub.f32 %v964, %v984
    %v986 = vmul.f32 %v958, %v983
    %v987 = vadd.f32 %v986, %v985
    %v988 = vmax.f32 %v987, 0.0
    %v989 = vld [vmem:[#allocation2 + $0xc0] sm:$0xf]
    %v990 = vld [vmem:[#allocation2 + $0xc4] sm:$0xf]
    %v991 = vld [vmem:[#allocation2 + $0xc8] sm:$0xf]
    %v992 = vld [vmem:[#allocation2 + $0xcc] sm:$0xf]
    %v993 = vld [vmem:[#allocation2 + $0xd0] sm:$0xf]
    %v994 = vld [vmem:[#allocation2 + $0xd4] sm:$0xf]
    %v995 = vld [vmem:[#allocation2 + $0xd8] sm:$0xf]
    %v996 = vld [vmem:[#allocation2 + $0xdc] sm:$0xf]
    %v997 = vld [vmem:[#allocation2 + $0xe0] sm:$0xf]
    %v998 = vld [vmem:[#allocation2 + $0xe4] sm:$0xf]
    %v999 = vld [vmem:[#allocation2 + $0xe8] sm:$0xf]
    %v1000 = vld [vmem:[#allocation2 + $0xec] sm:$0xf]
    %v1001 = vld [vmem:[#allocation2 + $0xf0] sm:$0xf]
    %v1002 = vld [vmem:[#allocation2 + $0xf4] sm:$0xf]
    %v1003 = vld [vmem:[#allocation2 + $0xf8] sm:$0xf]
    %v1004 = vld [vmem:[#allocation2 + $0xfc] sm:$0xf]
    %v1005 = vpack.c.bf16 %v988, %v988
    %v1022 = vunpack.c.l.b16 %v989
    %v1023 = vunpack.c.l.b16 %v990
    %v1024 = vunpack.c.l.b16 %v991
    %v1025 = vunpack.c.l.b16 %v992
    %v1026 = vunpack.c.l.b16 %v993
    %v1027 = vunpack.c.l.b16 %v994
    %v1028 = vunpack.c.l.b16 %v995
    %v1029 = vunpack.c.l.b16 %v996
    %v1030 = vunpack.c.l.b16 %v997
    %v1031 = vunpack.c.l.b16 %v998
    %v1032 = vunpack.c.l.b16 %v999
    %v1033 = vunpack.c.l.b16 %v1000
    %v1034 = vunpack.c.l.b16 %v1001
    %v1035 = vunpack.c.l.b16 %v1002
    %v1036 = vunpack.c.l.b16 %v1003
    %v1037 = vunpack.c.l.b16 %v1004
    %v1038 = vpack.c.b16 %v1023, %v1022
    %v1039 = vpack.c.b16 %v1025, %v1024
    %v1040 = vpack.c.b16 %v1027, %v1026
    %v1041 = vpack.c.b16 %v1029, %v1028
    %v1042 = vpack.c.b16 %v1031, %v1030
    %v1043 = vpack.c.b16 %v1033, %v1032
    %v1044 = vpack.c.b16 %v1035, %v1034
    %v1045 = vpack.c.b16 %v1037, %v1036
    %1054 = vmatprep.subr.bf16.mxu0 0
    %1055 = vmatpush1.bf16.msra.mxu0 %v1038
    %1056 = vmatprep.subr.bf16.mxu0 0
    %1057 = vmatpush1.bf16.msra.mxu0 %v1039
    %1058 = vmatprep.subr.bf16.mxu0 0
    %1059 = vmatpush1.bf16.msra.mxu0 %v1040
    %1060 = vmatprep.subr.bf16.mxu0 0
    %1061 = vmatpush1.bf16.msra.mxu0 %v1041
    %1062 = vmatprep.subr.bf16.mxu0 0
    %1063 = vmatpush1.bf16.msra.mxu0 %v1042
    %1064 = vmatprep.subr.bf16.mxu0 0
    %1065 = vmatpush1.bf16.msra.mxu0 %v1043
    %1066 = vmatprep.subr.bf16.mxu0 0
    %1067 = vmatpush1.bf16.msra.mxu0 %v1044
    %1068 = vmatprep.subr.bf16.mxu0 0
    %1069 = vmatpush1.bf16.msra.mxu0 %v1045
    %1070 = vmatprep.subr.bf16.mxu0 0
    %1071 = vmatpush1.bf16.msra.mxu0 0
    %1072 = vmatprep.subr.bf16.mxu0 0
    %1073 = vmatpush1.bf16.msra.mxu0 0
    %1074 = vmatprep.subr.bf16.mxu0 0
    %1075 = vmatpush1.bf16.msra.mxu0 0
    %1076 = vmatprep.subr.bf16.mxu0 0
    %1077 = vmatpush1.bf16.msra.mxu0 0
    %1078 = vmatprep.subr.bf16.mxu0 0
    %1079 = vmatpush1.bf16.msra.mxu0 0
    %1080 = vmatprep.subr.bf16.mxu0 0
    %1081 = vmatpush1.bf16.msra.mxu0 0
    %1082 = vmatprep.subr.bf16.mxu0 0
    %1083 = vmatpush1.bf16.msra.mxu0 0
    %1084 = vmatprep.subr.bf16.mxu0 0
    %1085 = vmatpush1.bf16.msra.mxu0 0
    %1086 = vmatprep.mubr.bf16.mxu0 0
    %1087 = vmatmul.mubr.bf16.gmra.mrb[0].mxu0 %v1005
    %v1088 = vpop.f32.mrb[0].mxu0
    %v1089 = vadd.f32 0.0, %v1088
    %v1090 = vpop.f32.mrb[0].mxu0
    %v1091 = vpop.f32.mrb[0].mxu0
    %v1092 = vpop.f32.mrb[0].mxu0
    %1093 = vdwg.mxu0
    %v1094 = vld [vmem:[#allocation8 + $0x6] ss:$0 sm:$0xff]
    %v1095 = vld [vmem:[#allocation8 + $0x7] ss:$0 sm:$0xff]
    %v1096 = vrot.slane %v1089, 4
    %v1097 = vadd.f32 %v1089, %v1096
    %v1098 = vrot.slane %v1097, 2
    %v1099 = vadd.f32 %v1097, %v1098
    %v1100 = vrot.slane %v1099, 1
    %v1101 = vadd.f32 %v1099, %v1100
    %v1102 = vmul.f32 %v1101, %v569
    %v1103 = vsub.f32 %v1089, %v1102
    %v1104 = vmul.f32 %v1103, %v1103
    %v1105 = vrot.slane %v1104, 4
    %v1106 = vadd.f32 %v1104, %v1105
    %v1107 = vrot.slane %v1106, 2
    %v1108 = vadd.f32 %v1106, %v1107
    %v1109 = vrot.slane %v1108, 1
    %v1110 = vadd.f32 %v1108, %v1109
    %v1111 = vmul.f32 %v1110, %v569
    %v1112 = vadd.f32 %v1111, 1e-05
    %v1113 = vrsqrt.pop %v1112
    %v1114 = vmul.f32 %v1094, %v1113
    %v1115 = vmul.f32 %v1102, %v1114
    %v1116 = vsub.f32 %v1095, %v1115
    %v1117 = vmul.f32 %v1089, %v1114
    %v1118 = vadd.f32 %v1117, %v1116
    %v1119 = vmax.f32 %v1118, 0.0
    %v1120 = vld [vmem:[#allocation2 + $0x100] sm:$0xf]
    %v1121 = vld [vmem:[#allocation2 + $0x104] sm:$0xf]
    %v1122 = vld [vmem:[#allocation2 + $0x108] sm:$0xf]
    %v1123 = vld [vmem:[#allocation2 + $0x10c] sm:$0xf]
    %v1124 = vld [vmem:[#allocation2 + $0x110] sm:$0xf]
    %v1125 = vld [vmem:[#allocation2 + $0x114] sm:$0xf]
    %v1126 = vld [vmem:[#allocation2 + $0x118] sm:$0xf]
    %v1127 = vld [vmem:[#allocation2 + $0x11c] sm:$0xf]
    %v1128 = vld [vmem:[#allocation2 + $0x120] sm:$0xf]
    %v1129 = vld [vmem:[#allocation2 + $0x124] sm:$0xf]
    %v1130 = vld [vmem:[#allocation2 + $0x128] sm:$0xf]
    %v1131 = vld [vmem:[#allocation2 + $0x12c] sm:$0xf]
    %v1132 = vld [vmem:[#allocation2 + $0x130] sm:$0xf]
    %v1133 = vld [vmem:[#allocation2 + $0x134] sm:$0xf]
    %v1134 = vld [vmem:[#allocation2 + $0x138] sm:$0xf]
    %v1135 = vld [vmem:[#allocation2 + $0x13c] sm:$0xf]
    %v1136 = vpack.c.bf16 %v1119, %v1119
    %v1153 = vunpack.c.l.b16 %v1120
    %v1154 = vunpack.c.l.b16 %v1121
    %v1155 = vunpack.c.l.b16 %v1122
    %v1156 = vunpack.c.l.b16 %v1123
    %v1157 = vunpack.c.l.b16 %v1124
    %v1158 = vunpack.c.l.b16 %v1125
    %v1159 = vunpack.c.l.b16 %v1126
    %v1160 = vunpack.c.l.b16 %v1127
    %v1161 = vunpack.c.l.b16 %v1128
    %v1162 = vunpack.c.l.b16 %v1129
    %v1163 = vunpack.c.l.b16 %v1130
    %v1164 = vunpack.c.l.b16 %v1131
    %v1165 = vunpack.c.l.b16 %v1132
    %v1166 = vunpack.c.l.b16 %v1133
    %v1167 = vunpack.c.l.b16 %v1134
    %v1168 = vunpack.c.l.b16 %v1135
    %v1169 = vpack.c.b16 %v1154, %v1153
    %v1170 = vpack.c.b16 %v1156, %v1155
    %v1171 = vpack.c.b16 %v1158, %v1157
    %v1172 = vpack.c.b16 %v1160, %v1159
    %v1173 = vpack.c.b16 %v1162, %v1161
    %v1174 = vpack.c.b16 %v1164, %v1163
    %v1175 = vpack.c.b16 %v1166, %v1165
    %v1176 = vpack.c.b16 %v1168, %v1167
    %1185 = vmatprep.subr.bf16.mxu0 0
    %1186 = vmatpush1.bf16.msra.mxu0 %v1169
    %1187 = vmatprep.subr.bf16.mxu0 0
    %1188 = vmatpush1.bf16.msra.mxu0 %v1170
    %1189 = vmatprep.subr.bf16.mxu0 0
    %1190 = vmatpush1.bf16.msra.mxu0 %v1171
    %1191 = vmatprep.subr.bf16.mxu0 0
    %1192 = vmatpush1.bf16.msra.mxu0 %v1172
    %1193 = vmatprep.subr.bf16.mxu0 0
    %1194 = vmatpush1.bf16.msra.mxu0 %v1173
    %1195 = vmatprep.subr.bf16.mxu0 0
    %1196 = vmatpush1.bf16.msra.mxu0 %v1174
    %1197 = vmatprep.subr.bf16.mxu0 0
    %1198 = vmatpush1.bf16.msra.mxu0 %v1175
    %1199 = vmatprep.subr.bf16.mxu0 0
    %1200 = vmatpush1.bf16.msra.mxu0 %v1176
    %1201 = vmatprep.subr.bf16.mxu0 0
    %1202 = vmatpush1.bf16.msra.mxu0 0
    %1203 = vmatprep.subr.bf16.mxu0 0
    %1204 = vmatpush1.bf16.msra.mxu0 0
    %1205 = vmatprep.subr.bf16.mxu0 0
    %1206 = vmatpush1.bf16.msra.mxu0 0
    %1207 = vmatprep.subr.bf16.mxu0 0
    %1208 = vmatpush1.bf16.msra.mxu0 0
    %1209 = vmatprep.subr.bf16.mxu0 0
    %1210 = vmatpush1.bf16.msra.mxu0 0
    %1211 = vmatprep.subr.bf16.mxu0 0
    %1212 = vmatpush1.bf16.msra.mxu0 0
    %1213 = vmatprep.subr.bf16.mxu0 0
    %1214 = vmatpush1.bf16.msra.mxu0 0
    %1215 = vmatprep.subr.bf16.mxu0 0
    %1216 = vmatpush1.bf16.msra.mxu0 0
    %1217 = vmatprep.mubr.bf16.mxu0 0
    %1218 = vmatmul.mubr.bf16.gmra.mrb[0].mxu0 %v1136
    %v1219 = vpop.f32.mrb[0].mxu0
    %v1220 = vadd.f32 0.0, %v1219
    %v1221 = vpop.f32.mrb[0].mxu0
    %v1222 = vpop.f32.mrb[0].mxu0
    %v1223 = vpop.f32.mrb[0].mxu0
    %1224 = vdwg.mxu0
    %v1225 = vld [vmem:[#allocation8 + $0x20] ss:$0 sm:$0xff]
    %v1226 = vld [vmem:[#allocation8 + $0x21] ss:$0 sm:$0xff]
    %v1227 = vrot.slane %v1220, 4
    %v1228 = vadd.f32 %v1220, %v1227
    %v1229 = vrot.slane %v1228, 2
    %v1230 = vadd.f32 %v1228, %v1229
    %v1231 = vrot.slane %v1230, 1
    %v1232 = vadd.f32 %v1230, %v1231
    %v1233 = vmul.f32 %v1232, %v569
    %v1234 = vsub.f32 %v1220, %v1233
    %v1235 = vmul.f32 %v1234, %v1234
    %v1236 = vrot.slane %v1235, 4
    %v1237 = vadd.f32 %v1235, %v1236
    %v1238 = vrot.slane %v1237, 2
    %v1239 = vadd.f32 %v1237, %v1238
    %v1240 = vrot.slane %v1239, 1
    %v1241 = vadd.f32 %v1239, %v1240
    %v1242 = vmul.f32 %v1241, %v569
    %v1243 = vadd.f32 %v1242, 1e-05
    %v1244 = vrsqrt.pop %v1243
    %v1245 = vmul.f32 %v1225, %v1244
    %v1246 = vmul.f32 %v1233, %v1245
    %v1247 = vsub.f32 %v1226, %v1246
    %v1248 = vmul.f32 %v1220, %v1245
    %v1249 = vadd.f32 %v1248, %v1247
    %v1250 = vmax.f32 %v1249, 0.0
    %v1251 = vld [vmem:[#allocation2 + $0x140] sm:$0xf]
    %v1252 = vld [vmem:[#allocation2 + $0x144] sm:$0xf]
    %v1253 = vld [vmem:[#allocation2 + $0x148] sm:$0xf]
    %v1254 = vld [vmem:[#allocation2 + $0x14c] sm:$0xf]
    %v1255 = vld [vmem:[#allocation2 + $0x150] sm:$0xf]
    %v1256 = vld [vmem:[#allocation2 + $0x154] sm:$0xf]
    %v1257 = vld [vmem:[#allocation2 + $0x158] sm:$0xf]
    %v1258 = vld [vmem:[#allocation2 + $0x15c] sm:$0xf]
    %v1259 = vld [vmem:[#allocation2 + $0x160] sm:$0xf]
    %v1260 = vld [vmem:[#allocation2 + $0x164] sm:$0xf]
    %v1261 = vld [vmem:[#allocation2 + $0x168] sm:$0xf]
    %v1262 = vld [vmem:[#allocation2 + $0x16c] sm:$0xf]
    %v1263 = vld [vmem:[#allocation2 + $0x170] sm:$0xf]
    %v1264 = vld [vmem:[#allocation2 + $0x174] sm:$0xf]
    %v1265 = vld [vmem:[#allocation2 + $0x178] sm:$0xf]
    %v1266 = vld [vmem:[#allocation2 + $0x17c] sm:$0xf]
    %v1267 = vpack.c.bf16 %v1250, %v1250
    %v1268 = vld [vmem:[#allocation8 + $0x22] ss:$0 sm:$0xff]
    %v1285 = vunpack.c.l.b16 %v1251
    %v1286 = vunpack.c.l.b16 %v1252
    %v1287 = vunpack.c.l.b16 %v1253
    %v1288 = vunpack.c.l.b16 %v1254
    %v1289 = vunpack.c.l.b16 %v1255
    %v1290 = vunpack.c.l.b16 %v1256
    %v1291 = vunpack.c.l.b16 %v1257
    %v1292 = vunpack.c.l.b16 %v1258
    %v1293 = vunpack.c.l.b16 %v1259
    %v1294 = vunpack.c.l.b16 %v1260
    %v1295 = vunpack.c.l.b16 %v1261
    %v1296 = vunpack.c.l.b16 %v1262
    %v1297 = vunpack.c.l.b16 %v1263
    %v1298 = vunpack.c.l.b16 %v1264
    %v1299 = vunpack.c.l.b16 %v1265
    %v1300 = vunpack.c.l.b16 %v1266
    %v1301 = vpack.c.b16 %v1286, %v1285
    %v1302 = vpack.c.b16 %v1288, %v1287
    %v1303 = vpack.c.b16 %v1290, %v1289
    %v1304 = vpack.c.b16 %v1292, %v1291
    %v1305 = vpack.c.b16 %v1294, %v1293
    %v1306 = vpack.c.b16 %v1296, %v1295
    %v1307 = vpack.c.b16 %v1298, %v1297
    %v1308 = vpack.c.b16 %v1300, %v1299
    %1317 = vmatprep.subr.bf16.mxu0 0
    %1318 = vmatpush1.bf16.msra.mxu0 %v1301
    %1319 = vmatprep.subr.bf16.mxu0 0
    %1320 = vmatpush1.bf16.msra.mxu0 %v1302
    %1321 = vmatprep.subr.bf16.mxu0 0
    %1322 = vmatpush1.bf16.msra.mxu0 %v1303
    %1323 = vmatprep.subr.bf16.mxu0 0
    %1324 = vmatpush1.bf16.msra.mxu0 %v1304
    %1325 = vmatprep.subr.bf16.mxu0 0
    %1326 = vmatpush1.bf16.msra.mxu0 %v1305
    %1327 = vmatprep.subr.bf16.mxu0 0
    %1328 = vmatpush1.bf16.msra.mxu0 %v1306
    %1329 = vmatprep.subr.bf16.mxu0 0
    %1330 = vmatpush1.bf16.msra.mxu0 %v1307
    %1331 = vmatprep.subr.bf16.mxu0 0
    %1332 = vmatpush1.bf16.msra.mxu0 %v1308
    %1333 = vmatprep.subr.bf16.mxu0 0
    %1334 = vmatpush1.bf16.msra.mxu0 0
    %1335 = vmatprep.subr.bf16.mxu0 0
    %1336 = vmatpush1.bf16.msra.mxu0 0
    %1337 = vmatprep.subr.bf16.mxu0 0
    %1338 = vmatpush1.bf16.msra.mxu0 0
    %1339 = vmatprep.subr.bf16.mxu0 0
    %1340 = vmatpush1.bf16.msra.mxu0 0
    %1341 = vmatprep.subr.bf16.mxu0 0
    %1342 = vmatpush1.bf16.msra.mxu0 0
    %1343 = vmatprep.subr.bf16.mxu0 0
    %1344 = vmatpush1.bf16.msra.mxu0 0
    %1345 = vmatprep.subr.bf16.mxu0 0
    %1346 = vmatpush1.bf16.msra.mxu0 0
    %1347 = vmatprep.subr.bf16.mxu0 0
    %1348 = vmatpush1.bf16.msra.mxu0 0
    %1349 = vmatprep.mubr.bf16.mxu0 0
    %1350 = vmatmul.mubr.bf16.gmra.mrb[0].mxu0 %v1267
    %v1351 = vpop.f32.mrb[0].mxu0
    %v1352 = vadd.f32 %v1268, %v1351
    %v1353 = vpop.f32.mrb[0].mxu0
    %v1354 = vpop.f32.mrb[0].mxu0
    %v1355 = vpop.f32.mrb[0].mxu0
    %1356 = vdwg.mxu0
    %1357 = vst [vmem:[#allocation10] sm:$0xff] %v1352
    %v1358 = vld [vmem:[#allocation2 + $0x180] sm:$0xf]
    %v1359 = vld [vmem:[#allocation2 + $0x184] sm:$0xf]
    %v1360 = vld [vmem:[#allocation2 + $0x188] sm:$0xf]
    %v1361 = vld [vmem:[#allocation2 + $0x18c] sm:$0xf]
    %v1362 = vld [vmem:[#allocation2 + $0x190] sm:$0xf]
    %v1363 = vld [vmem:[#allocation2 + $0x194] sm:$0xf]
    %v1364 = vld [vmem:[#allocation2 + $0x198] sm:$0xf]
    %v1365 = vld [vmem:[#allocation2 + $0x19c] sm:$0xf]
    %v1366 = vld [vmem:[#allocation2 + $0x1a0] sm:$0xf]
    %v1367 = vld [vmem:[#allocation2 + $0x1a4] sm:$0xf]
    %v1368 = vld [vmem:[#allocation2 + $0x1a8] sm:$0xf]
    %v1369 = vld [vmem:[#allocation2 + $0x1ac] sm:$0xf]
    %v1370 = vld [vmem:[#allocation2 + $0x1b0] sm:$0xf]
    %v1371 = vld [vmem:[#allocation2 + $0x1b4] sm:$0xf]
    %v1372 = vld [vmem:[#allocation2 + $0x1b8] sm:$0xf]
    %v1373 = vld [vmem:[#allocation2 + $0x1bc] sm:$0xf]
    %v1374 = vpack.c.bf16 %v1352, %v1352
    %v1391 = vunpack.c.l.b16 %v1358
    %v1392 = vunpack.c.l.b16 %v1359
    %v1393 = vunpack.c.l.b16 %v1360
    %v1394 = vunpack.c.l.b16 %v1361
    %v1395 = vunpack.c.l.b16 %v1362
    %v1396 = vunpack.c.l.b16 %v1363
    %v1397 = vunpack.c.l.b16 %v1364
    %v1398 = vunpack.c.l.b16 %v1365
    %v1399 = vunpack.c.l.b16 %v1366
    %v1400 = vunpack.c.l.b16 %v1367
    %v1401 = vunpack.c.l.b16 %v1368
    %v1402 = vunpack.c.l.b16 %v1369
    %v1403 = vunpack.c.l.b16 %v1370
    %v1404 = vunpack.c.l.b16 %v1371
    %v1405 = vunpack.c.l.b16 %v1372
    %v1406 = vunpack.c.l.b16 %v1373
    %v1407 = vpack.c.b16 %v1392, %v1391
    %v1408 = vpack.c.b16 %v1394, %v1393
    %v1409 = vpack.c.b16 %v1396, %v1395
    %v1410 = vpack.c.b16 %v1398, %v1397
    %v1411 = vpack.c.b16 %v1400, %v1399
    %v1412 = vpack.c.b16 %v1402, %v1401
    %v1413 = vpack.c.b16 %v1404, %v1403
    %v1414 = vpack.c.b16 %v1406, %v1405
    %1423 = vmatprep.subr.bf16.mxu0 0
    %1424 = vmatpush1.bf16.msra.mxu0 %v1407
    %1425 = vmatprep.subr.bf16.mxu0 0
    %1426 = vmatpush1.bf16.msra.mxu0 %v1408
    %1427 = vmatprep.subr.bf16.mxu0 0
    %1428 = vmatpush1.bf16.msra.mxu0 %v1409
    %1429 = vmatprep.subr.bf16.mxu0 0
    %1430 = vmatpush1.bf16.msra.mxu0 %v1410
    %1431 = vmatprep.subr.bf16.mxu0 0
    %1432 = vmatpush1.bf16.msra.mxu0 %v1411
    %1433 = vmatprep.subr.bf16.mxu0 0
    %1434 = vmatpush1.bf16.msra.mxu0 %v1412
    %1435 = vmatprep.subr.bf16.mxu0 0
    %1436 = vmatpush1.bf16.msra.mxu0 %v1413
    %1437 = vmatprep.subr.bf16.mxu0 0
    %1438 = vmatpush1.bf16.msra.mxu0 %v1414
    %1439 = vmatprep.subr.bf16.mxu0 0
    %1440 = vmatpush1.bf16.msra.mxu0 0
    %1441 = vmatprep.subr.bf16.mxu0 0
    %1442 = vmatpush1.bf16.msra.mxu0 0
    %1443 = vmatprep.subr.bf16.mxu0 0
    %1444 = vmatpush1.bf16.msra.mxu0 0
    %1445 = vmatprep.subr.bf16.mxu0 0
    %1446 = vmatpush1.bf16.msra.mxu0 0
    %1447 = vmatprep.subr.bf16.mxu0 0
    %1448 = vmatpush1.bf16.msra.mxu0 0
    %1449 = vmatprep.subr.bf16.mxu0 0
    %1450 = vmatpush1.bf16.msra.mxu0 0
    %1451 = vmatprep.subr.bf16.mxu0 0
    %1452 = vmatpush1.bf16.msra.mxu0 0
    %1453 = vmatprep.subr.bf16.mxu0 0
    %1454 = vmatpush1.bf16.msra.mxu0 0
    %1455 = vmatprep.mubr.bf16.mxu0 0
    %1456 = vmatmul.mubr.bf16.gmra.mrb[0].mxu0 %v1374
    %v1457 = vpop.f32.mrb[0].mxu0
    %v1458 = vadd.f32 0.0, %v1457
    %v1459 = vpop.f32.mrb[0].mxu0
    %v1460 = vpop.f32.mrb[0].mxu0
    %v1461 = vpop.f32.mrb[0].mxu0
    %1462 = vdwg.mxu0
    %v1463 = vld [vmem:[#allocation8 + $0x23] ss:$0 sm:$0xff]
    %v1464 = vld [vmem:[#allocation8 + $0x24] ss:$0 sm:$0xff]
    %v1465 = vrot.slane %v1458, 4
    %v1466 = vadd.f32 %v1458, %v1465
    %v1467 = vrot.slane %v1466, 2
    %v1468 = vadd.f32 %v1466, %v1467
    %v1469 = vrot.slane %v1468, 1
    %v1470 = vadd.f32 %v1468, %v1469
    %v1471 = vmul.f32 %v1470, %v569
    %v1472 = vsub.f32 %v1458, %v1471
    %v1473 = vmul.f32 %v1472, %v1472
    %v1474 = vrot.slane %v1473, 4
    %v1475 = vadd.f32 %v1473, %v1474
    %v1476 = vrot.slane %v1475, 2
    %v1477 = vadd.f32 %v1475, %v1476
    %v1478 = vrot.slane %v1477, 1
    %v1479 = vadd.f32 %v1477, %v1478
    %v1480 = vmul.f32 %v1479, %v569
    %v1481 = vadd.f32 %v1480, 1e-05
    %v1482 = vrsqrt.pop %v1481
    %v1483 = vmul.f32 %v1463, %v1482
    %v1484 = vmul.f32 %v1471, %v1483
    %v1485 = vsub.f32 %v1464, %v1484
    %v1486 = vmul.f32 %v1458, %v1483
    %v1487 = vadd.f32 %v1486, %v1485
    %v1488 = vmax.f32 %v1487, 0.0
    %v1489 = vld [vmem:[#allocation2 + $0x1c0] sm:$0xf]
    %v1490 = vld [vmem:[#allocation2 + $0x1c4] sm:$0xf]
    %v1491 = vld [vmem:[#allocation2 + $0x1c8] sm:$0xf]
    %v1492 = vld [vmem:[#allocation2 + $0x1cc] sm:$0xf]
    %v1493 = vld [vmem:[#allocation2 + $0x1d0] sm:$0xf]
    %v1494 = vld [vmem:[#allocation2 + $0x1d4] sm:$0xf]
    %v1495 = vld [vmem:[#allocation2 + $0x1d8] sm:$0xf]
    %v1496 = vld [vmem:[#allocation2 + $0x1dc] sm:$0xf]
    %v1497 = vld [vmem:[#allocation2 + $0x1e0] sm:$0xf]
    %v1498 = vld [vmem:[#allocation2 + $0x1e4] sm:$0xf]
    %v1499 = vld [vmem:[#allocation2 + $0x1e8] sm:$0xf]
    %v1500 = vld [vmem:[#allocation2 + $0x1ec] sm:$0xf]
    %v1501 = vld [vmem:[#allocation2 + $0x1f0] sm:$0xf]
    %v1502 = vld [vmem:[#allocation2 + $0x1f4] sm:$0xf]
    %v1503 = vld [vmem:[#allocation2 + $0x1f8] sm:$0xf]
    %v1504 = vld [vmem:[#allocation2 + $0x1fc] sm:$0xf]
    %v1505 = vpack.c.bf16 %v1488, %v1488
    %v1522 = vunpack.c.l.b16 %v1489
    %v1523 = vunpack.c.l.b16 %v1490
    %v1524 = vunpack.c.l.b16 %v1491
    %v1525 = vunpack.c.l.b16 %v1492
    %v1526 = vunpack.c.l.b16 %v1493
    %v1527 = vunpack.c.l.b16 %v1494
    %v1528 = vunpack.c.l.b16 %v1495
    %v1529 = vunpack.c.l.b16 %v1496
    %v1530 = vunpack.c.l.b16 %v1497
    %v1531 = vunpack.c.l.b16 %v1498
    %v1532 = vunpack.c.l.b16 %v1499
    %v1533 = vunpack.c.l.b16 %v1500
    %v1534 = vunpack.c.l.b16 %v1501
    %v1535 = vunpack.c.l.b16 %v1502
    %v1536 = vunpack.c.l.b16 %v1503
    %v1537 = vunpack.c.l.b16 %v1504
    %v1538 = vpack.c.b16 %v1523, %v1522
    %v1539 = vpack.c.b16 %v1525, %v1524
    %v1540 = vpack.c.b16 %v1527, %v1526
    %v1541 = vpack.c.b16 %v1529, %v1528
    %v1542 = vpack.c.b16 %v1531, %v1530
    %v1543 = vpack.c.b16 %v1533, %v1532
    %v1544 = vpack.c.b16 %v1535, %v1534
    %v1545 = vpack.c.b16 %v1537, %v1536
    %1554 = vmatprep.subr.bf16.mxu0 0
    %1555 = vmatpush1.bf16.msra.mxu0 %v1538
    %1556 = vmatprep.subr.bf16.mxu0 0
    %1557 = vmatpush1.bf16.msra.mxu0 %v1539
    %1558 = vmatprep.subr.bf16.mxu0 0
    %1559 = vmatpush1.bf16.msra.mxu0 %v1540
    %1560 = vmatprep.subr.bf16.mxu0 0
    %1561 = vmatpush1.bf16.msra.mxu0 %v1541
    %1562 = vmatprep.subr.bf16.mxu0 0
    %1563 = vmatpush1.bf16.msra.mxu0 %v1542
    %1564 = vmatprep.subr.bf16.mxu0 0
    %1565 = vmatpush1.bf16.msra.mxu0 %v1543
    %1566 = vmatprep.subr.bf16.mxu0 0
    %1567 = vmatpush1.bf16.msra.mxu0 %v1544
    %1568 = vmatprep.subr.bf16.mxu0 0
    %1569 = vmatpush1.bf16.msra.mxu0 %v1545
    %1570 = vmatprep.subr.bf16.mxu0 0
    %1571 = vmatpush1.bf16.msra.mxu0 0
    %1572 = vmatprep.subr.bf16.mxu0 0
    %1573 = vmatpush1.bf16.msra.mxu0 0
    %1574 = vmatprep.subr.bf16.mxu0 0
    %1575 = vmatpush1.bf16.msra.mxu0 0
    %1576 = vmatprep.subr.bf16.mxu0 0
    %1577 = vmatpush1.bf16.msra.mxu0 0
    %1578 = vmatprep.subr.bf16.mxu0 0
    %1579 = vmatpush1.bf16.msra.mxu0 0
    %1580 = vmatprep.subr.bf16.mxu0 0
    %1581 = vmatpush1.bf16.msra.mxu0 0
    %1582 = vmatprep.subr.bf16.mxu0 0
    %1583 = vmatpush1.bf16.msra.mxu0 0
    %1584 = vmatprep.subr.bf16.mxu0 0
    %1585 = vmatpush1.bf16.msra.mxu0 0
    %1586 = vmatprep.mubr.bf16.mxu0 0
    %1587 = vmatmul.mubr.bf16.gmra.mrb[0].mxu0 %v1505
    %v1588 = vpop.f32.mrb[0].mxu0
    %v1589 = vadd.f32 0.0, %v1588
    %v1590 = vpop.f32.mrb[0].mxu0
    %v1591 = vpop.f32.mrb[0].mxu0
    %v1592 = vpop.f32.mrb[0].mxu0
    %1593 = vdwg.mxu0
    %v1594 = vld [vmem:[#allocation8 + $0x25] ss:$0 sm:$0xff]
    %v1595 = vld [vmem:[#allocation8 + $0x26] ss:$0 sm:$0xff]
    %v1596 = vrot.slane %v1589, 4
    %v1597 = vadd.f32 %v1589, %v1596
    %v1598 = vrot.slane %v1597, 2
    %v1599 = vadd.f32 %v1597, %v1598
    %v1600 = vrot.slane %v1599, 1
    %v1601 = vadd.f32 %v1599, %v1600
    %v1602 = vmul.f32 %v1601, %v569
    %v1603 = vsub.f32 %v1589, %v1602
    %v1604 = vmul.f32 %v1603, %v1603
    %v1605 = vrot.slane %v1604, 4
    %v1606 = vadd.f32 %v1604, %v1605
    %v1607 = vrot.slane %v1606, 2
    %v1608 = vadd.f32 %v1606, %v1607
    %v1609 = vrot.slane %v1608, 1
    %v1610 = vadd.f32 %v1608, %v1609
    %v1611 = vmul.f32 %v1610, %v569
    %v1612 = vadd.f32 %v1611, 1e-05
    %v1613 = vrsqrt.pop %v1612
    %v1614 = vmul.f32 %v1594, %v1613
    %v1615 = vmul.f32 %v1602, %v1614
    %v1616 = vsub.f32 %v1595, %v1615
    %v1617 = vmul.f32 %v1589, %v1614
    %v1618 = vadd.f32 %v1617, %v1616
    %v1619 = vmax.f32 %v1618, 0.0
    %v1620 = vld [vmem:[#allocation2 + $0x200] sm:$0xf]
    %v1621 = vld [vmem:[#allocation2 + $0x204] sm:$0xf]
    %v1622 = vld [vmem:[#allocation2 + $0x208] sm:$0xf]
    %v1623 = vld [vmem:[#allocation2 + $0x20c] sm:$0xf]
    %v1624 = vld [vmem:[#allocation2 + $0x210] sm:$0xf]
    %v1625 = vld [vmem:[#allocation2 + $0x214] sm:$0xf]
    %v1626 = vld [vmem:[#allocation2 + $0x218] sm:$0xf]
    %v1627 = vld [vmem:[#allocation2 + $0x21c] sm:$0xf]
    %v1628 = vld [vmem:[#allocation2 + $0x220] sm:$0xf]
    %v1629 = vld [vmem:[#allocation2 + $0x224] sm:$0xf]
    %v1630 = vld [vmem:[#allocation2 + $0x228] sm:$0xf]
    %v1631 = vld [vmem:[#allocation2 + $0x22c] sm:$0xf]
    %v1632 = vld [vmem:[#allocation2 + $0x230] sm:$0xf]
    %v1633 = vld [vmem:[#allocation2 + $0x234] sm:$0xf]
    %v1634 = vld [vmem:[#allocation2 + $0x238] sm:$0xf]
    %v1635 = vld [vmem:[#allocation2 + $0x23c] sm:$0xf]
    %v1636 = vpack.c.bf16 %v1619, %v1619
    %v1653 = vunpack.c.l.b16 %v1620
    %v1654 = vunpack.c.l.b16 %v1621
    %v1655 = vunpack.c.l.b16 %v1622
    %v1656 = vunpack.c.l.b16 %v1623
    %v1657 = vunpack.c.l.b16 %v1624
    %v1658 = vunpack.c.l.b16 %v1625
    %v1659 = vunpack.c.l.b16 %v1626
    %v1660 = vunpack.c.l.b16 %v1627
    %v1661 = vunpack.c.l.b16 %v1628
    %v1662 = vunpack.c.l.b16 %v1629
    %v1663 = vunpack.c.l.b16 %v1630
    %v1664 = vunpack.c.l.b16 %v1631
    %v1665 = vunpack.c.l.b16 %v1632
    %v1666 = vunpack.c.l.b16 %v1633
    %v1667 = vunpack.c.l.b16 %v1634
    %v1668 = vunpack.c.l.b16 %v1635
    %v1669 = vpack.c.b16 %v1654, %v1653
    %v1670 = vpack.c.b16 %v1656, %v1655
    %v1671 = vpack.c.b16 %v1658, %v1657
    %v1672 = vpack.c.b16 %v1660, %v1659
    %v1673 = vpack.c.b16 %v1662, %v1661
    %v1674 = vpack.c.b16 %v1664, %v1663
    %v1675 = vpack.c.b16 %v1666, %v1665
    %v1676 = vpack.c.b16 %v1668, %v1667
    %1685 = vmatprep.subr.bf16.mxu0 0
    %1686 = vmatpush1.bf16.msra.mxu0 %v1669
    %1687 = vmatprep.subr.bf16.mxu0 0
    %1688 = vmatpush1.bf16.msra.mxu0 %v1670
    %1689 = vmatprep.subr.bf16.mxu0 0
    %1690 = vmatpush1.bf16.msra.mxu0 %v1671
    %1691 = vmatprep.subr.bf16.mxu0 0
    %1692 = vmatpush1.bf16.msra.mxu0 %v1672
    %1693 = vmatprep.subr.bf16.mxu0 0
    %1694 = vmatpush1.bf16.msra.mxu0 %v1673
    %1695 = vmatprep.subr.bf16.mxu0 0
    %1696 = vmatpush1.bf16.msra.mxu0 %v1674
    %1697 = vmatprep.subr.bf16.mxu0 0
    %1698 = vmatpush1.bf16.msra.mxu0 %v1675
    %1699 = vmatprep.subr.bf16.mxu0 0
    %1700 = vmatpush1.bf16.msra.mxu0 %v1676
    %1701 = vmatprep.subr.bf16.mxu0 0
    %1702 = vmatpush1.bf16.msra.mxu0 0
    %1703 = vmatprep.subr.bf16.mxu0 0
    %1704 = vmatpush1.bf16.msra.mxu0 0
    %1705 = vmatprep.subr.bf16.mxu0 0
    %1706 = vmatpush1.bf16.msra.mxu0 0
    %1707 = vmatprep.subr.bf16.mxu0 0
    %1708 = vmatpush1.bf16.msra.mxu0 0
    %1709 = vmatprep.subr.bf16.mxu0 0
    %1710 = vmatpush1.bf16.msra.mxu0 0
    %1711 = vmatprep.subr.bf16.mxu0 0
    %1712 = vmatpush1.bf16.msra.mxu0 0
    %1713 = vmatprep.subr.bf16.mxu0 0
    %1714 = vmatpush1.bf16.msra.mxu0 0
    %1715 = vmatprep.subr.bf16.mxu0 0
    %1716 = vmatpush1.bf16.msra.mxu0 0
    %1717 = vmatprep.mubr.bf16.mxu0 0
    %1718 = vmatmul.mubr.bf16.gmra.mrb[0].mxu0 %v1636
    %v1719 = vpop.f32.mrb[0].mxu0
    %v1720 = vadd.f32 0.0, %v1719
    %v1721 = vpop.f32.mrb[0].mxu0
    %v1722 = vpop.f32.mrb[0].mxu0
    %v1723 = vpop.f32.mrb[0].mxu0
    %1724 = vdwg.mxu0
    %v1725 = vld [vmem:[#allocation8 + $0x27] ss:$0 sm:$0xff]
    %v1726 = vld [vmem:[#allocation8 + $0x40] ss:$0 sm:$0xff]
    %v1727 = vrot.slane %v1720, 4
    %v1728 = vadd.f32 %v1720, %v1727
    %v1729 = vrot.slane %v1728, 2
    %v1730 = vadd.f32 %v1728, %v1729
    %v1731 = vrot.slane %v1730, 1
    %v1732 = vadd.f32 %v1730, %v1731
    %v1733 = vmul.f32 %v1732, %v569
    %v1734 = vsub.f32 %v1720, %v1733
    %v1735 = vmul.f32 %v1734, %v1734
    %v1736 = vrot.slane %v1735, 4
    %v1737 = vadd.f32 %v1735, %v1736
    %v1738 = vrot.slane %v1737, 2
    %v1739 = vadd.f32 %v1737, %v1738
    %v1740 = vrot.slane %v1739, 1
    %v1741 = vadd.f32 %v1739, %v1740
    %v1742 = vmul.f32 %v1741, %v569
    %v1743 = vadd.f32 %v1742, 1e-05
    %v1744 = vrsqrt.pop %v1743
    %v1745 = vmul.f32 %v1725, %v1744
    %v1746 = vmul.f32 %v1733, %v1745
    %v1747 = vsub.f32 %v1726, %v1746
    %v1748 = vmul.f32 %v1720, %v1745
    %v1749 = vadd.f32 %v1748, %v1747
    %v1750 = vmax.f32 %v1749, 0.0
    %v1751 = vld [vmem:[#allocation2 + $0x240] sm:$0xf]
    %v1752 = vld [vmem:[#allocation2 + $0x244] sm:$0xf]
    %v1753 = vld [vmem:[#allocation2 + $0x248] sm:$0xf]
    %v1754 = vld [vmem:[#allocation2 + $0x24c] sm:$0xf]
    %v1755 = vld [vmem:[#allocation2 + $0x250] sm:$0xf]
    %v1756 = vld [vmem:[#allocation2 + $0x254] sm:$0xf]
    %v1757 = vld [vmem:[#allocation2 + $0x258] sm:$0xf]
    %v1758 = vld [vmem:[#allocation2 + $0x25c] sm:$0xf]
    %v1759 = vld [vmem:[#allocation2 + $0x260] sm:$0xf]
    %v1760 = vld [vmem:[#allocation2 + $0x264] sm:$0xf]
    %v1761 = vld [vmem:[#allocation2 + $0x268] sm:$0xf]
    %v1762 = vld [vmem:[#allocation2 + $0x26c] sm:$0xf]
    %v1763 = vld [vmem:[#allocation2 + $0x270] sm:$0xf]
    %v1764 = vld [vmem:[#allocation2 + $0x274] sm:$0xf]
    %v1765 = vld [vmem:[#allocation2 + $0x278] sm:$0xf]
    %v1766 = vld [vmem:[#allocation2 + $0x27c] sm:$0xf]
    %v1767 = vpack.c.bf16 %v1750, %v1750
    %v1784 = vunpack.c.l.b16 %v1751
    %v1785 = vunpack.c.l.b16 %v1752
    %v1786 = vunpack.c.l.b16 %v1753
    %v1787 = vunpack.c.l.b16 %v1754
    %v1788 = vunpack.c.l.b16 %v1755
    %v1789 = vunpack.c.l.b16 %v1756
    %v1790 = vunpack.c.l.b16 %v1757
    %v1791 = vunpack.c.l.b16 %v1758
    %v1792 = vunpack.c.l.b16 %v1759
    %v1793 = vunpack.c.l.b16 %v1760
    %v1794 = vunpack.c.l.b16 %v1761
    %v1795 = vunpack.c.l.b16 %v1762
    %v1796 = vunpack.c.l.b16 %v1763
    %v1797 = vunpack.c.l.b16 %v1764
    %v1798 = vunpack.c.l.b16 %v1765
    %v1799 = vunpack.c.l.b16 %v1766
    %v1800 = vpack.c.b16 %v1785, %v1784
    %v1801 = vpack.c.b16 %v1787, %v1786
    %v1802 = vpack.c.b16 %v1789, %v1788
    %v1803 = vpack.c.b16 %v1791, %v1790
    %v1804 = vpack.c.b16 %v1793, %v1792
    %v1805 = vpack.c.b16 %v1795, %v1794
    %v1806 = vpack.c.b16 %v1797, %v1796
    %v1807 = vpack.c.b16 %v1799, %v1798
    %1816 = vmatprep.subr.bf16.mxu0 0
    %1817 = vmatpush1.bf16.msra.mxu0 %v1800
    %1818 = vmatprep.subr.bf16.mxu0 0
    %1819 = vmatpush1.bf16.msra.mxu0 %v1801
    %1820 = vmatprep.subr.bf16.mxu0 0
    %1821 = vmatpush1.bf16.msra.mxu0 %v1802
    %1822 = vmatprep.subr.bf16.mxu0 0
    %1823 = vmatpush1.bf16.msra.mxu0 %v1803
    %1824 = vmatprep.subr.bf16.mxu0 0
    %1825 = vmatpush1.bf16.msra.mxu0 %v1804
    %1826 = vmatprep.subr.bf16.mxu0 0
    %1827 = vmatpush1.bf16.msra.mxu0 %v1805
    %1828 = vmatprep.subr.bf16.mxu0 0
    %1829 = vmatpush1.bf16.msra.mxu0 %v1806
    %1830 = vmatprep.subr.bf16.mxu0 0
    %1831 = vmatpush1.bf16.msra.mxu0 %v1807
    %1832 = vmatprep.subr.bf16.mxu0 0
    %1833 = vmatpush1.bf16.msra.mxu0 0
    %1834 = vmatprep.subr.bf16.mxu0 0
    %1835 = vmatpush1.bf16.msra.mxu0 0
    %1836 = vmatprep.subr.bf16.mxu0 0
    %1837 = vmatpush1.bf16.msra.mxu0 0
    %1838 = vmatprep.subr.bf16.mxu0 0
    %1839 = vmatpush1.bf16.msra.mxu0 0
    %1840 = vmatprep.subr.bf16.mxu0 0
    %1841 = vmatpush1.bf16.msra.mxu0 0
    %1842 = vmatprep.subr.bf16.mxu0 0
    %1843 = vmatpush1.bf16.msra.mxu0 0
    %1844 = vmatprep.subr.bf16.mxu0 0
    %1845 = vmatpush1.bf16.msra.mxu0 0
    %1846 = vmatprep.subr.bf16.mxu0 0
    %1847 = vmatpush1.bf16.msra.mxu0 0
    %1848 = vmatprep.mubr.bf16.mxu0 0
    %1849 = vmatmul.mubr.bf16.gmra.mrb[0].mxu0 %v1767
    %v1850 = vpop.f32.mrb[0].mxu0
    %v1851 = vadd.f32 0.0, %v1850
    %v1852 = vpop.f32.mrb[0].mxu0
    %v1853 = vpop.f32.mrb[0].mxu0
    %v1854 = vpop.f32.mrb[0].mxu0
    %1855 = vdwg.mxu0
    %v1856 = vld [vmem:[#allocation8 + $0x41] ss:$0 sm:$0xff]
    %v1857 = vld [vmem:[#allocation8 + $0x42] ss:$0 sm:$0xff]
    %v1858 = vrot.slane %v1851, 4
    %v1859 = vadd.f32 %v1851, %v1858
    %v1860 = vrot.slane %v1859, 2
    %v1861 = vadd.f32 %v1859, %v1860
    %v1862 = vrot.slane %v1861, 1
    %v1863 = vadd.f32 %v1861, %v1862
    %v1864 = vmul.f32 %v1863, %v569
    %v1865 = vsub.f32 %v1851, %v1864
    %v1866 = vmul.f32 %v1865, %v1865
    %v1867 = vrot.slane %v1866, 4
    %v1868 = vadd.f32 %v1866, %v1867
    %v1869 = vrot.slane %v1868, 2
    %v1870 = vadd.f32 %v1868, %v1869
    %v1871 = vrot.slane %v1870, 1
    %v1872 = vadd.f32 %v1870, %v1871
    %v1873 = vmul.f32 %v1872, %v569
    %v1874 = vadd.f32 %v1873, 1e-05
    %v1875 = vrsqrt.pop %v1874
    %v1876 = vmul.f32 %v1856, %v1875
    %v1877 = vmul.f32 %v1864, %v1876
    %v1878 = vsub.f32 %v1857, %v1877
    %v1879 = vmul.f32 %v1851, %v1876
    %v1880 = vadd.f32 %v1879, %v1878
    %v1881 = vmax.f32 %v1880, 0.0
    %v1882 = vld [vmem:[#allocation5 + $0x200] sm:$0xff]
    %v1883 = vld [vmem:[#allocation5 + $0x208] sm:$0xff]
    %v1884 = vld [vmem:[#allocation5 + $0x210] sm:$0xff]
    %v1885 = vld [vmem:[#allocation5 + $0x218] sm:$0xff]
    %v1886 = vld [vmem:[#allocation5 + $0x220] sm:$0xff]
    %v1887 = vld [vmem:[#allocation5 + $0x228] sm:$0xff]
    %v1888 = vld [vmem:[#allocation5 + $0x230] sm:$0xff]
    %v1889 = vld [vmem:[#allocation5 + $0x238] sm:$0xff]
    %v1890 = vld [vmem:[#allocation5 + $0x240] sm:$0xff]
    %v1891 = vld [vmem:[#allocation5 + $0x248] sm:$0xff]
    %v1892 = vld [vmem:[#allocation5 + $0x250] sm:$0xff]
    %v1893 = vld [vmem:[#allocation5 + $0x258] sm:$0xff]
    %v1894 = vld [vmem:[#allocation5 + $0x260] sm:$0xff]
    %v1895 = vld [vmem:[#allocation5 + $0x268] sm:$0xff]
    %v1896 = vld [vmem:[#allocation5 + $0x270] sm:$0xff]
    %v1897 = vld [vmem:[#allocation5 + $0x278] sm:$0xff]
    %v1898 = vpack.c.bf16 %v1881, %v1881
    %v1915 = vunpack.c.l.b16 %v1882
    %v1916 = vunpack.c.h.b16 %v1882
    %v1917 = vunpack.c.l.b16 %v1883
    %v1918 = vunpack.c.h.b16 %v1883
    %v1919 = vunpack.c.l.b16 %v1884
    %v1920 = vunpack.c.h.b16 %v1884
    %v1921 = vunpack.c.l.b16 %v1885
    %v1922 = vunpack.c.h.b16 %v1885
    %v1923 = vunpack.c.l.b16 %v1886
    %v1924 = vunpack.c.h.b16 %v1886
    %v1925 = vunpack.c.l.b16 %v1887
    %v1926 = vunpack.c.h.b16 %v1887
    %v1927 = vunpack.c.l.b16 %v1888
    %v1928 = vunpack.c.h.b16 %v1888
    %v1929 = vunpack.c.l.b16 %v1889
    %v1930 = vunpack.c.h.b16 %v1889
    %v1931 = vunpack.c.l.b16 %v1890
    %v1932 = vunpack.c.h.b16 %v1890
    %v1933 = vunpack.c.l.b16 %v1891
    %v1934 = vunpack.c.h.b16 %v1891
    %v1935 = vunpack.c.l.b16 %v1892
    %v1936 = vunpack.c.h.b16 %v1892
    %v1937 = vunpack.c.l.b16 %v1893
    %v1938 = vunpack.c.h.b16 %v1893
    %v1939 = vunpack.c.l.b16 %v1894
    %v1940 = vunpack.c.h.b16 %v1894
    %v1941 = vunpack.c.l.b16 %v1895
    %v1942 = vunpack.c.h.b16 %v1895
    %v1943 = vunpack.c.l.b16 %v1896
    %v1944 = vunpack.c.h.b16 %v1896
    %v1945 = vunpack.c.l.b16 %v1897
    %v1946 = vunpack.c.h.b16 %v1897
    %v1947 = vpack.c.b16 %v1917, %v1915
    %v1948 = vpack.c.b16 %v1918, %v1916
    %v1949 = vpack.c.b16 %v1921, %v1919
    %v1950 = vpack.c.b16 %v1922, %v1920
    %v1951 = vpack.c.b16 %v1925, %v1923
    %v1952 = vpack.c.b16 %v1926, %v1924
    %v1953 = vpack.c.b16 %v1929, %v1927
    %v1954 = vpack.c.b16 %v1930, %v1928
    %v1955 = vpack.c.b16 %v1933, %v1931
    %v1956 = vpack.c.b16 %v1934, %v1932
    %v1957 = vpack.c.b16 %v1937, %v1935
    %v1958 = vpack.c.b16 %v1938, %v1936
    %v1959 = vpack.c.b16 %v1941, %v1939
    %v1960 = vpack.c.b16 %v1942, %v1940
    %v1961 = vpack.c.b16 %v1945, %v1943
    %v1962 = vpack.c.b16 %v1946, %v1944
    %1979 = vmatprep.subr.bf16.mxu0 %v1948
    %1980 = vmatpush1.bf16.msra.mxu0 %v1947
    %1981 = vmatprep.subr.bf16.mxu0 %v1950
    %1982 = vmatpush1.bf16.msra.mxu0 %v1949
    %1983 = vmatprep.subr.bf16.mxu0 %v1952
    %1984 = vmatpush1.bf16.msra.mxu0 %v1951
    %1985 = vmatprep.subr.bf16.mxu0 %v1954
    %1986 = vmatpush1.bf16.msra.mxu0 %v1953
    %1987 = vmatprep.subr.bf16.mxu0 %v1956
    %1988 = vmatpush1.bf16.msra.mxu0 %v1955
    %1989 = vmatprep.subr.bf16.mxu0 %v1958
    %1990 = vmatpush1.bf16.msra.mxu0 %v1957
    %1991 = vmatprep.subr.bf16.mxu0 %v1960
    %1992 = vmatpush1.bf16.msra.mxu0 %v1959
    %1993 = vmatprep.subr.bf16.mxu0 %v1962
    %1994 = vmatpush1.bf16.msra.mxu0 %v1961
    %1995 = vmatprep.subr.bf16.mxu0 0
    %1996 = vmatpush1.bf16.msra.mxu0 0
    %1997 = vmatprep.subr.bf16.mxu0 0
    %1998 = vmatpush1.bf16.msra.mxu0 0
    %1999 = vmatprep.subr.bf16.mxu0 0
    %2000 = vmatpush1.bf16.msra.mxu0 0
    %2001 = vmatprep.subr.bf16.mxu0 0
    %2002 = vmatpush1.bf16.msra.mxu0 0
    %2003 = vmatprep.subr.bf16.mxu0 0
    %2004 = vmatpush1.bf16.msra.mxu0 0
    %2005 = vmatprep.subr.bf16.mxu0 0
    %2006 = vmatpush1.bf16.msra.mxu0 0
    %2007 = vmatprep.subr.bf16.mxu0 0
    %2008 = vmatpush1.bf16.msra.mxu0 0
    %2009 = vmatprep.subr.bf16.mxu0 0
    %2010 = vmatpush1.bf16.msra.mxu0 0
    %2011 = vmatprep.mubr.bf16.mxu0 0
    %2012 = vmatmul.mubr.bf16.gmra.mrb[0].mxu0 %v1898
    %v2013 = vpop.f32.mrb[0].mxu0
    %v2014 = vadd.f32 0.0, %v2013
    %v2015 = vpop.f32.mrb[0].mxu0
    %v2016 = vadd.f32 0.0, %v2015
    %v2017 = vpop.f32.mrb[0].mxu0
    %v2018 = vpop.f32.mrb[0].mxu0
    %2019 = vdwg.mxu0
    %s2020 = scalar_lea.vmem [#allocation8], 67
    %v2021 = vld [vmem:[%s2020] ss:$8 sm:$0x3]
    %s2022 = scalar_lea.vmem [#allocation8], 68
    %v2023 = vld [vmem:[%s2022] ss:$8 sm:$0x3]
    %v2024 = vrot.slane %v2014, 4
    %v2025 = vadd.f32 %v2014, %v2024
    %v2026 = vrot.slane %v2025, 2
    %v2027 = vadd.f32 %v2025, %v2026
    %v2028 = vrot.slane %v2027, 1
    %v2029 = vadd.f32 %v2027, %v2028
    %v2030 = vrot.slane %v2016, 4
    %v2031 = vadd.f32 %v2016, %v2030
    %v2032 = vrot.slane %v2031, 2
    %v2033 = vadd.f32 %v2031, %v2032
    %v2034 = vrot.slane %v2033, 1
    %v2035 = vadd.f32 %v2033, %v2034
    %v2036 = vmul.f32 %v2029, %v569
    %v2037 = vmul.f32 %v2035, %v569
    %v2038 = vsub.f32 %v2014, %v2036
    %v2039 = vsub.f32 %v2016, %v2037
    %v2040 = vmul.f32 %v2038, %v2038
    %v2041 = vmul.f32 %v2039, %v2039
    %v2042 = vrot.slane %v2040, 4
    %v2043 = vadd.f32 %v2040, %v2042
    %v2044 = vrot.slane %v2043, 2
    %v2045 = vadd.f32 %v2043, %v2044
    %v2046 = vrot.slane %v2045, 1
    %v2047 = vadd.f32 %v2045, %v2046
    %v2048 = vrot.slane %v2041, 4
    %v2049 = vadd.f32 %v2041, %v2048
    %v2050 = vrot.slane %v2049, 2
    %v2051 = vadd.f32 %v2049, %v2050
    %v2052 = vrot.slane %v2051, 1
    %v2053 = vadd.f32 %v2051, %v2052
    %v2054 = vmul.f32 %v2047, %v569
    %v2055 = vmul.f32 %v2053, %v569
    %v2056 = vadd.f32 %v2054, 1e-05
    %v2057 = vadd.f32 %v2055, 1e-05
    %v2058 = vrsqrt.pop %v2056
    %v2059 = vrsqrt.pop %v2057
    %v2062 = vcombine.low %v2058, %v2059
    %v2064 = vunpack.c.l.s4 1966171168
    %v2065 = vunpack.c.0.s8 %v2064
    %v2066 = vlaneseq
    %v2067 = vshrl.u32 %v2066, 7
    %v2068 = vsub.s32 %v2065, %v2067
    %v2069 = vrot.slane %v2062, %v2068
    %v2071 = vunpack.c.l.s4 1966171168
    %v2072 = vunpack.c.0.s8 %v2071
    %v2073 = vlaneseq
    %v2074 = vshrl.u32 %v2073, 7
    %v2075 = vsub.s32 %v2072, %v2074
    %v2076 = vrot.slane %v2069, %v2075
    %v2078 = vmul.f32 %v2021, %v2076
    %v2080 = vlaneseq
    %v2081 = vshrl.u32 %v2080, 7
    %v2082 = vsub.s32 0, %v2081
    %v2083 = vrot.slane %v2078, %v2082
    %v2084 = vlaneseq
    %v2085 = vshrl.u32 %v2084, 7
    %v2086 = vsub.s32 1, %v2085
    %v2087 = vrot.slane %v2078, %v2086
    %v2090 = vmul.f32 %v2036, %v2083
    %v2091 = vmul.f32 %v2037, %v2087
    %v2094 = vcombine.low %v2090, %v2091
    %v2096 = vunpack.c.l.s4 1966171168
    %v2097 = vunpack.c.0.s8 %v2096
    %v2098 = vlaneseq
    %v2099 = vshrl.u32 %v2098, 7
    %v2100 = vsub.s32 %v2097, %v2099
    %v2101 = vrot.slane %v2094, %v2100
    %v2103 = vunpack.c.l.s4 1966171168
    %v2104 = vunpack.c.0.s8 %v2103
    %v2105 = vlaneseq
    %v2106 = vshrl.u32 %v2105, 7
    %v2107 = vsub.s32 %v2104, %v2106
    %v2108 = vrot.slane %v2101, %v2107
    %v2110 = vsub.f32 %v2023, %v2108
    %v2111 = vmul.f32 %v2014, %v2083
    %v2112 = vmul.f32 %v2016, %v2087
    %v2114 = vlaneseq
    %v2115 = vshrl.u32 %v2114, 7
    %v2116 = vsub.s32 0, %v2115
    %v2117 = vrot.slane %v2110, %v2116
    %v2118 = vlaneseq
    %v2119 = vshrl.u32 %v2118, 7
    %v2120 = vsub.s32 1, %v2119
    %v2121 = vrot.slane %v2110, %v2120
    %v2124 = vadd.f32 %v2111, %v2117
    %v2125 = vadd.f32 %v2112, %v2121
    %v2126 = vmax.f32 %v2124, 0.0
    %v2127 = vmax.f32 %v2125, 0.0
    %v2128 = vld [vmem:[#allocation7] sm:$0xff]
    %v2129 = vld [vmem:[#allocation7 + $0x8] sm:$0xff]
    %v2130 = vld [vmem:[#allocation7 + $0x10] sm:$0xff]
    %v2131 = vld [vmem:[#allocation7 + $0x18] sm:$0xff]
    %v2132 = vld [vmem:[#allocation7 + $0x20] sm:$0xff]
    %v2133 = vld [vmem:[#allocation7 + $0x28] sm:$0xff]
    %v2134 = vld [vmem:[#allocation7 + $0x30] sm:$0xff]
    %v2135 = vld [vmem:[#allocation7 + $0x38] sm:$0xff]
    %v2136 = vld [vmem:[#allocation7 + $0x40] sm:$0xff]
    %v2137 = vld [vmem:[#allocation7 + $0x48] sm:$0xff]
    %v2138 = vld [vmem:[#allocation7 + $0x50] sm:$0xff]
    %v2139 = vld [vmem:[#allocation7 + $0x58] sm:$0xff]
    %v2140 = vld [vmem:[#allocation7 + $0x60] sm:$0xff]
    %v2141 = vld [vmem:[#allocation7 + $0x68] sm:$0xff]
    %v2142 = vld [vmem:[#allocation7 + $0x70] sm:$0xff]
    %v2143 = vld [vmem:[#allocation7 + $0x78] sm:$0xff]
    %v2144 = vld [vmem:[#allocation7 + $0x80] sm:$0xff]
    %v2145 = vld [vmem:[#allocation7 + $0x88] sm:$0xff]
    %v2146 = vld [vmem:[#allocation7 + $0x90] sm:$0xff]
    %v2147 = vld [vmem:[#allocation7 + $0x98] sm:$0xff]
    %v2148 = vld [vmem:[#allocation7 + $0xa0] sm:$0xff]
    %v2149 = vld [vmem:[#allocation7 + $0xa8] sm:$0xff]
    %v2150 = vld [vmem:[#allocation7 + $0xb0] sm:$0xff]
    %v2151 = vld [vmem:[#allocation7 + $0xb8] sm:$0xff]
    %v2152 = vld [vmem:[#allocation7 + $0xc0] sm:$0xff]
    %v2153 = vld [vmem:[#allocation7 + $0xc8] sm:$0xff]
    %v2154 = vld [vmem:[#allocation7 + $0xd0] sm:$0xff]
    %v2155 = vld [vmem:[#allocation7 + $0xd8] sm:$0xff]
    %v2156 = vld [vmem:[#allocation7 + $0xe0] sm:$0xff]
    %v2157 = vld [vmem:[#allocation7 + $0xe8] sm:$0xff]
    %v2158 = vld [vmem:[#allocation7 + $0xf0] sm:$0xff]
    %v2159 = vld [vmem:[#allocation7 + $0xf8] sm:$0xff]
    %v2160 = vld [vmem:[#allocation7 + $0x100] sm:$0xff]
    %v2161 = vld [vmem:[#allocation7 + $0x108] sm:$0xff]
    %v2162 = vld [vmem:[#allocation7 + $0x110] sm:$0xff]
    %v2163 = vld [vmem:[#allocation7 + $0x118] sm:$0xff]
    %v2164 = vld [vmem:[#allocation7 + $0x120] sm:$0xff]
    %v2165 = vld [vmem:[#allocation7 + $0x128] sm:$0xff]
    %v2166 = vld [vmem:[#allocation7 + $0x130] sm:$0xff]
    %v2167 = vld [vmem:[#allocation7 + $0x138] sm:$0xff]
    %v2168 = vld [vmem:[#allocation7 + $0x140] sm:$0xff]
    %v2169 = vld [vmem:[#allocation7 + $0x148] sm:$0xff]
    %v2170 = vld [vmem:[#allocation7 + $0x150] sm:$0xff]
    %v2171 = vld [vmem:[#allocation7 + $0x158] sm:$0xff]
    %v2172 = vld [vmem:[#allocation7 + $0x160] sm:$0xff]
    %v2173 = vld [vmem:[#allocation7 + $0x168] sm:$0xff]
    %v2174 = vld [vmem:[#allocation7 + $0x170] sm:$0xff]
    %v2175 = vld [vmem:[#allocation7 + $0x178] sm:$0xff]
    %v2176 = vld [vmem:[#allocation7 + $0x180] sm:$0xff]
    %v2177 = vld [vmem:[#allocation7 + $0x188] sm:$0xff]
    %v2178 = vld [vmem:[#allocation7 + $0x190] sm:$0xff]
    %v2179 = vld [vmem:[#allocation7 + $0x198] sm:$0xff]
    %v2180 = vld [vmem:[#allocation7 + $0x1a0] sm:$0xff]
    %v2181 = vld [vmem:[#allocation7 + $0x1a8] sm:$0xff]
    %v2182 = vld [vmem:[#allocation7 + $0x1b0] sm:$0xff]
    %v2183 = vld [vmem:[#allocation7 + $0x1b8] sm:$0xff]
    %v2184 = vld [vmem:[#allocation7 + $0x1c0] sm:$0xff]
    %v2185 = vld [vmem:[#allocation7 + $0x1c8] sm:$0xff]
    %v2186 = vld [vmem:[#allocation7 + $0x1d0] sm:$0xff]
    %v2187 = vld [vmem:[#allocation7 + $0x1d8] sm:$0xff]
    %v2188 = vld [vmem:[#allocation7 + $0x1e0] sm:$0xff]
    %v2189 = vld [vmem:[#allocation7 + $0x1e8] sm:$0xff]
    %v2190 = vld [vmem:[#allocation7 + $0x1f0] sm:$0xff]
    %v2191 = vld [vmem:[#allocation7 + $0x1f8] sm:$0xff]
    %v2192 = vpack.c.bf16 %v2126, %v2126
    %v2193 = vpack.c.bf16 %v2127, %v2127
    %s2194 = scalar_lea.vmem [#allocation8], 69
    %v2195 = vld [vmem:[%s2194] ss:$8 sm:$0xf]
    %v2197 = vlaneseq
    %v2198 = vshrl.u32 %v2197, 7
    %v2199 = vsub.s32 0, %v2198
    %v2200 = vrot.slane %v2195, %v2199
    %v2201 = vlaneseq
    %v2202 = vshrl.u32 %v2201, 7
    %v2203 = vsub.s32 1, %v2202
    %v2204 = vrot.slane %v2195, %v2203
    %v2205 = vlaneseq
    %v2206 = vshrl.u32 %v2205, 7
    %v2207 = vsub.s32 2, %v2206
    %v2208 = vrot.slane %v2195, %v2207
    %v2209 = vlaneseq
    %v2210 = vshrl.u32 %v2209, 7
    %v2211 = vsub.s32 3, %v2210
    %v2212 = vrot.slane %v2195, %v2211
    %v2281 = vunpack.c.l.b16 %v2128
    %v2282 = vunpack.c.h.b16 %v2128
    %v2283 = vunpack.c.l.b16 %v2129
    %v2284 = vunpack.c.h.b16 %v2129
    %v2285 = vunpack.c.l.b16 %v2130
    %v2286 = vunpack.c.h.b16 %v2130
    %v2287 = vunpack.c.l.b16 %v2131
    %v2288 = vunpack.c.h.b16 %v2131
    %v2289 = vunpack.c.l.b16 %v2132
    %v2290 = vunpack.c.h.b16 %v2132
    %v2291 = vunpack.c.l.b16 %v2133
    %v2292 = vunpack.c.h.b16 %v2133
    %v2293 = vunpack.c.l.b16 %v2134
    %v2294 = vunpack.c.h.b16 %v2134
    %v2295 = vunpack.c.l.b16 %v2135
    %v2296 = vunpack.c.h.b16 %v2135
    %v2297 = vunpack.c.l.b16 %v2136
    %v2298 = vunpack.c.h.b16 %v2136
    %v2299 = vunpack.c.l.b16 %v2137
    %v2300 = vunpack.c.h.b16 %v2137
    %v2301 = vunpack.c.l.b16 %v2138
    %v2302 = vunpack.c.h.b16 %v2138
    %v2303 = vunpack.c.l.b16 %v2139
    %v2304 = vunpack.c.h.b16 %v2139
    %v2305 = vunpack.c.l.b16 %v2140
    %v2306 = vunpack.c.h.b16 %v2140
    %v2307 = vunpack.c.l.b16 %v2141
    %v2308 = vunpack.c.h.b16 %v2141
    %v2309 = vunpack.c.l.b16 %v2142
    %v2310 = vunpack.c.h.b16 %v2142
    %v2311 = vunpack.c.l.b16 %v2143
    %v2312 = vunpack.c.h.b16 %v2143
    %v2313 = vunpack.c.l.b16 %v2144
    %v2314 = vunpack.c.h.b16 %v2144
    %v2315 = vunpack.c.l.b16 %v2145
    %v2316 = vunpack.c.h.b16 %v2145
    %v2317 = vunpack.c.l.b16 %v2146
    %v2318 = vunpack.c.h.b16 %v2146
    %v2319 = vunpack.c.l.b16 %v2147
    %v2320 = vunpack.c.h.b16 %v2147
    %v2321 = vunpack.c.l.b16 %v2148
    %v2322 = vunpack.c.h.b16 %v2148
    %v2323 = vunpack.c.l.b16 %v2149
    %v2324 = vunpack.c.h.b16 %v2149
    %v2325 = vunpack.c.l.b16 %v2150
    %v2326 = vunpack.c.h.b16 %v2150
    %v2327 = vunpack.c.l.b16 %v2151
    %v2328 = vunpack.c.h.b16 %v2151
    %v2329 = vunpack.c.l.b16 %v2152
    %v2330 = vunpack.c.h.b16 %v2152
    %v2331 = vunpack.c.l.b16 %v2153
    %v2332 = vunpack.c.h.b16 %v2153
    %v2333 = vunpack.c.l.b16 %v2154
    %v2334 = vunpack.c.h.b16 %v2154
    %v2335 = vunpack.c.l.b16 %v2155
    %v2336 = vunpack.c.h.b16 %v2155
    %v2337 = vunpack.c.l.b16 %v2156
    %v2338 = vunpack.c.h.b16 %v2156
    %v2339 = vunpack.c.l.b16 %v2157
    %v2340 = vunpack.c.h.b16 %v2157
    %v2341 = vunpack.c.l.b16 %v2158
    %v2342 = vunpack.c.h.b16 %v2158
    %v2343 = vunpack.c.l.b16 %v2159
    %v2344 = vunpack.c.h.b16 %v2159
    %v2345 = vunpack.c.l.b16 %v2160
    %v2346 = vunpack.c.h.b16 %v2160
    %v2347 = vunpack.c.l.b16 %v2161
    %v2348 = vunpack.c.h.b16 %v2161
    %v2349 = vunpack.c.l.b16 %v2162
    %v2350 = vunpack.c.h.b16 %v2162
    %v2351 = vunpack.c.l.b16 %v2163
    %v2352 = vunpack.c.h.b16 %v2163
    %v2353 = vunpack.c.l.b16 %v2164
    %v2354 = vunpack.c.h.b16 %v2164
    %v2355 = vunpack.c.l.b16 %v2165
    %v2356 = vunpack.c.h.b16 %v2165
    %v2357 = vunpack.c.l.b16 %v2166
    %v2358 = vunpack.c.h.b16 %v2166
    %v2359 = vunpack.c.l.b16 %v2167
    %v2360 = vunpack.c.h.b16 %v2167
    %v2361 = vunpack.c.l.b16 %v2168
    %v2362 = vunpack.c.h.b16 %v2168
    %v2363 = vunpack.c.l.b16 %v2169
    %v2364 = vunpack.c.h.b16 %v2169
    %v2365 = vunpack.c.l.b16 %v2170
    %v2366 = vunpack.c.h.b16 %v2170
    %v2367 = vunpack.c.l.b16 %v2171
    %v2368 = vunpack.c.h.b16 %v2171
    %v2369 = vunpack.c.l.b16 %v2172
    %v2370 = vunpack.c.h.b16 %v2172
    %v2371 = vunpack.c.l.b16 %v2173
    %v2372 = vunpack.c.h.b16 %v2173
    %v2373 = vunpack.c.l.b16 %v2174
    %v2374 = vunpack.c.h.b16 %v2174
    %v2375 = vunpack.c.l.b16 %v2175
    %v2376 = vunpack.c.h.b16 %v2175
    %v2377 = vunpack.c.l.b16 %v2176
    %v2378 = vunpack.c.h.b16 %v2176
    %v2379 = vunpack.c.l.b16 %v2177
    %v2380 = vunpack.c.h.b16 %v2177
    %v2381 = vunpack.c.l.b16 %v2178
    %v2382 = vunpack.c.h.b16 %v2178
    %v2383 = vunpack.c.l.b16 %v2179
    %v2384 = vunpack.c.h.b16 %v2179
    %v2385 = vunpack.c.l.b16 %v2180
    %v2386 = vunpack.c.h.b16 %v2180
    %v2387 = vunpack.c.l.b16 %v2181
    %v2388 = vunpack.c.h.b16 %v2181
    %v2389 = vunpack.c.l.b16 %v2182
    %v2390 = vunpack.c.h.b16 %v2182
    %v2391 = vunpack.c.l.b16 %v2183
    %v2392 = vunpack.c.h.b16 %v2183
    %v2393 = vunpack.c.l.b16 %v2184
    %v2394 = vunpack.c.h.b16 %v2184
    %v2395 = vunpack.c.l.b16 %v2185
    %v2396 = vunpack.c.h.b16 %v2185
    %v2397 = vunpack.c.l.b16 %v2186
    %v2398 = vunpack.c.h.b16 %v2186
    %v2399 = vunpack.c.l.b16 %v2187
    %v2400 = vunpack.c.h.b16 %v2187
    %v2401 = vunpack.c.l.b16 %v2188
    %v2402 = vunpack.c.h.b16 %v2188
    %v2403 = vunpack.c.l.b16 %v2189
    %v2404 = vunpack.c.h.b16 %v2189
    %v2405 = vunpack.c.l.b16 %v2190
    %v2406 = vunpack.c.h.b16 %v2190
    %v2407 = vunpack.c.l.b16 %v2191
    %v2408 = vunpack.c.h.b16 %v2191
    %v2409 = vpack.c.b16 %v2285, %v2281
    %v2410 = vpack.c.b16 %v2286, %v2282
    %v2411 = vpack.c.b16 %v2287, %v2283
    %v2412 = vpack.c.b16 %v2288, %v2284
    %v2413 = vpack.c.b16 %v2293, %v2289
    %v2414 = vpack.c.b16 %v2294, %v2290
    %v2415 = vpack.c.b16 %v2295, %v2291
    %v2416 = vpack.c.b16 %v2296, %v2292
    %v2417 = vpack.c.b16 %v2301, %v2297
    %v2418 = vpack.c.b16 %v2302, %v2298
    %v2419 = vpack.c.b16 %v2303, %v2299
    %v2420 = vpack.c.b16 %v2304, %v2300
    %v2421 = vpack.c.b16 %v2309, %v2305
    %v2422 = vpack.c.b16 %v2310, %v2306
    %v2423 = vpack.c.b16 %v2311, %v2307
    %v2424 = vpack.c.b16 %v2312, %v2308
    %v2425 = vpack.c.b16 %v2317, %v2313
    %v2426 = vpack.c.b16 %v2318, %v2314
    %v2427 = vpack.c.b16 %v2319, %v2315
    %v2428 = vpack.c.b16 %v2320, %v2316
    %v2429 = vpack.c.b16 %v2325, %v2321
    %v2430 = vpack.c.b16 %v2326, %v2322
    %v2431 = vpack.c.b16 %v2327, %v2323
    %v2432 = vpack.c.b16 %v2328, %v2324
    %v2433 = vpack.c.b16 %v2333, %v2329
    %v2434 = vpack.c.b16 %v2334, %v2330
    %v2435 = vpack.c.b16 %v2335, %v2331
    %v2436 = vpack.c.b16 %v2336, %v2332
    %v2437 = vpack.c.b16 %v2341, %v2337
    %v2438 = vpack.c.b16 %v2342, %v2338
    %v2439 = vpack.c.b16 %v2343, %v2339
    %v2440 = vpack.c.b16 %v2344, %v2340
    %v2441 = vpack.c.b16 %v2349, %v2345
    %v2442 = vpack.c.b16 %v2350, %v2346
    %v2443 = vpack.c.b16 %v2351, %v2347
    %v2444 = vpack.c.b16 %v2352, %v2348
    %v2445 = vpack.c.b16 %v2357, %v2353
    %v2446 = vpack.c.b16 %v2358, %v2354
    %v2447 = vpack.c.b16 %v2359, %v2355
    %v2448 = vpack.c.b16 %v2360, %v2356
    %v2449 = vpack.c.b16 %v2365, %v2361
    %v2450 = vpack.c.b16 %v2366, %v2362
    %v2451 = vpack.c.b16 %v2367, %v2363
    %v2452 = vpack.c.b16 %v2368, %v2364
    %v2453 = vpack.c.b16 %v2373, %v2369
    %v2454 = vpack.c.b16 %v2374, %v2370
    %v2455 = vpack.c.b16 %v2375, %v2371
    %v2456 = vpack.c.b16 %v2376, %v2372
    %v2457 = vpack.c.b16 %v2381, %v2377
    %v2458 = vpack.c.b16 %v2382, %v2378
    %v2459 = vpack.c.b16 %v2383, %v2379
    %v2460 = vpack.c.b16 %v2384, %v2380
    %v2461 = vpack.c.b16 %v2389, %v2385
    %v2462 = vpack.c.b16 %v2390, %v2386
    %v2463 = vpack.c.b16 %v2391, %v2387
    %v2464 = vpack.c.b16 %v2392, %v2388
    %v2465 = vpack.c.b16 %v2397, %v2393
    %v2466 = vpack.c.b16 %v2398, %v2394
    %v2467 = vpack.c.b16 %v2399, %v2395
    %v2468 = vpack.c.b16 %v2400, %v2396
    %v2469 = vpack.c.b16 %v2405, %v2401
    %v2470 = vpack.c.b16 %v2406, %v2402
    %v2471 = vpack.c.b16 %v2407, %v2403
    %v2472 = vpack.c.b16 %v2408, %v2404
    %2537 = vmatprep.subr.bf16.mxu0 %v2410
    %2538 = vmatpush1.bf16.msra.mxu0 %v2409
    %2539 = vmatprep.subr.bf16.mxu0 %v2414
    %2540 = vmatpush1.bf16.msra.mxu0 %v2413
    %2541 = vmatprep.subr.bf16.mxu0 %v2418
    %2542 = vmatpush1.bf16.msra.mxu0 %v2417
    %2543 = vmatprep.subr.bf16.mxu0 %v2422
    %2544 = vmatpush1.bf16.msra.mxu0 %v2421
    %2545 = vmatprep.subr.bf16.mxu0 %v2426
    %2546 = vmatpush1.bf16.msra.mxu0 %v2425
    %2547 = vmatprep.subr.bf16.mxu0 %v2430
    %2548 = vmatpush1.bf16.msra.mxu0 %v2429
    %2549 = vmatprep.subr.bf16.mxu0 %v2434
    %2550 = vmatpush1.bf16.msra.mxu0 %v2433
    %2551 = vmatprep.subr.bf16.mxu0 %v2438
    %2552 = vmatpush1.bf16.msra.mxu0 %v2437
    %2553 = vmatprep.subr.bf16.mxu0 %v2442
    %2554 = vmatpush1.bf16.msra.mxu0 %v2441
    %2555 = vmatprep.subr.bf16.mxu0 %v2446
    %2556 = vmatpush1.bf16.msra.mxu0 %v2445
    %2557 = vmatprep.subr.bf16.mxu0 %v2450
    %2558 = vmatpush1.bf16.msra.mxu0 %v2449
    %2559 = vmatprep.subr.bf16.mxu0 %v2454
    %2560 = vmatpush1.bf16.msra.mxu0 %v2453
    %2561 = vmatprep.subr.bf16.mxu0 %v2458
    %2562 = vmatpush1.bf16.msra.mxu0 %v2457
    %2563 = vmatprep.subr.bf16.mxu0 %v2462
    %2564 = vmatpush1.bf16.msra.mxu0 %v2461
    %2565 = vmatprep.subr.bf16.mxu0 %v2466
    %2566 = vmatpush1.bf16.msra.mxu0 %v2465
    %2567 = vmatprep.subr.bf16.mxu0 %v2470
    %2568 = vmatpush1.bf16.msra.mxu0 %v2469
    %2569 = vmatprep.mubr.bf16.mxu0 %v2193
    %2570 = vmatmul.mubr.bf16.gmra.mrb[0].mxu0 %v2192
    %v2571 = vpop.f32.mrb[0].mxu0
    %v2572 = vadd.f32 %v2200, %v2571
    %v2573 = vpop.f32.mrb[0].mxu0
    %v2574 = vadd.f32 %v2204, %v2573
    %v2575 = vpop.f32.mrb[0].mxu0
    %v2576 = vpop.f32.mrb[0].mxu0
    %2577 = vdwg.mxu0
    %2578 = vmatprep.subr.bf16.mxu0 %v2412
    %2579 = vmatpush1.bf16.msra.mxu0 %v2411
    %2580 = vmatprep.subr.bf16.mxu0 %v2416
    %2581 = vmatpush1.bf16.msra.mxu0 %v2415
    %2582 = vmatprep.subr.bf16.mxu0 %v2420
    %2583 = vmatpush1.bf16.msra.mxu0 %v2419
    %2584 = vmatprep.subr.bf16.mxu0 %v2424
    %2585 = vmatpush1.bf16.msra.mxu0 %v2423
    %2586 = vmatprep.subr.bf16.mxu0 %v2428
    %2587 = vmatpush1.bf16.msra.mxu0 %v2427
    %2588 = vmatprep.subr.bf16.mxu0 %v2432
    %2589 = vmatpush1.bf16.msra.mxu0 %v2431
    %2590 = vmatprep.subr.bf16.mxu0 %v2436
    %2591 = vmatpush1.bf16.msra.mxu0 %v2435
    %2592 = vmatprep.subr.bf16.mxu0 %v2440
    %2593 = vmatpush1.bf16.msra.mxu0 %v2439
    %2594 = vmatprep.subr.bf16.mxu0 %v2444
    %2595 = vmatpush1.bf16.msra.mxu0 %v2443
    %2596 = vmatprep.subr.bf16.mxu0 %v2448
    %2597 = vmatpush1.bf16.msra.mxu0 %v2447
    %2598 = vmatprep.subr.bf16.mxu0 %v2452
    %2599 = vmatpush1.bf16.msra.mxu0 %v2451
    %2600 = vmatprep.subr.bf16.mxu0 %v2456
    %2601 = vmatpush1.bf16.msra.mxu0 %v2455
    %2602 = vmatprep.subr.bf16.mxu0 %v2460
    %2603 = vmatpush1.bf16.msra.mxu0 %v2459
    %2604 = vmatprep.subr.bf16.mxu0 %v2464
    %2605 = vmatpush1.bf16.msra.mxu0 %v2463
    %2606 = vmatprep.subr.bf16.mxu0 %v2468
    %2607 = vmatpush1.bf16.msra.mxu0 %v2467
    %2608 = vmatprep.subr.bf16.mxu0 %v2472
    %2609 = vmatpush1.bf16.msra.mxu0 %v2471
    %2610 = vmatprep.mubr.bf16.mxu0 %v2193
    %2611 = vmatmul.mubr.bf16.gmra.mrb[0].mxu0 %v2192
    %v2612 = vpop.f32.mrb[0].mxu0
    %v2613 = vadd.f32 %v2208, %v2612
    %v2614 = vpop.f32.mrb[0].mxu0
    %v2615 = vadd.f32 %v2212, %v2614
    %v2616 = vpop.f32.mrb[0].mxu0
    %v2617 = vpop.f32.mrb[0].mxu0
    %2618 = vdwg.mxu0
    %2619 = vst [vmem:[#allocation11] sm:$0xff] %v2572
    %2620 = vst [vmem:[#allocation11 + $0x8] sm:$0xff] %v2574
    %2621 = vst [vmem:[#allocation11 + $0x10] sm:$0xff] %v2613
    %2622 = vst [vmem:[#allocation11 + $0x18] sm:$0xff] %v2615
    // Predicated region
    $region38: #{forward.1} parent=1 // pred_check
      _
    $region39: #{forward.1} parent=1 // pred_check_branch
      %2624 = sbr.rel (0) target = $region41
    $region40: #{forward.1} parent=1 // pred_region
      %s2626 = ssub.s32 128, 128
      %2627 = vsyncadd [#allocation4], %s2626
      %s2629 = sshll.u32 [#allocation10], 4
      %s2630 = int_to_ptr.vmem [resolvable:$true] %s2629
      %2632 = dma.vmem_to_hbm [thread:$0]  %s2630, 128, %s5, [#allocation4]
    $region41: #{forward.1} parent=1 // pred_fallthru
      _
    // Predicated region
    $region42: #{forward.1} parent=1 // pred_check
      _
    $region43: #{forward.1} parent=1 // pred_check_branch
      %2634 = sbr.rel (0) target = $region45
    $region44: #{forward.1} parent=1 // pred_region
      %s2636 = ssub.s32 512, 512
      %2637 = vsyncadd [#allocation12], %s2636
      %s2639 = sshll.u32 [#allocation11], 4
      %s2640 = int_to_ptr.vmem [resolvable:$true] %s2639
      %2642 = dma.vmem_to_hbm [thread:$0]  %s2640, 512, %s6, [#allocation12]
    $region45: #{forward.1} parent=1 // pred_fallthru
      _
    // Predicated region
    $region46: #{forward.1} parent=1 // pred_check
      _
    $region47: #{forward.1} parent=1 // pred_check_branch
      %2644 = sbr.rel (0) target = $region49
    $region48: #{forward.1} parent=1 // pred_region
      %2645 = dma.done [#allocation4], 128
    $region49: #{forward.1} parent=1 // pred_fallthru
      _
    // Predicated region
    $region50: #{forward.1} parent=1 // pred_check
      _
    $region51: #{forward.1} parent=1 // pred_check_branch
      %2647 = sbr.rel (0) target = $region53
    $region52: #{forward.1} parent=1 // pred_region
      %2648 = dma.done [#allocation12], 512
    $region53: #{forward.1} parent=1 // pred_fallthru
      _
    %2649 = vsyncpa [#allocation3], 1
    %2650 = vsyncpa [#allocation6], 1
    %2651 = vsyncpa [#allocation9], 1
    %2652 = vsyncpa [#allocation4], 1
    %2653 = vsyncpa [#allocation12], 1

</llo_original>
